<compile_context>
chip_gen: v7x
topology: tpu7x:2x2x1
jax: 0.10.0
libtpu: 0.0.40
codegen_flags: <defaults>
</compile_context>

<pallas_src>
import functools
import math

import jax
import jax.numpy as jnp
from jax.experimental import pallas as pl
from jax.experimental.pallas import tpu as pltpu


def _round_up(a, b):
    return (a + b - 1) // b * b


# ---------------------------------------------------------------------------
# Kernel 1: convolution (K*K tap matmuls on the MXU) + per-tile partial sums
#           for the instance-norm statistics.
# ---------------------------------------------------------------------------
def _conv_partial_stats_kernel(xa_ref, xb_ref, w_ref, y_ref, s1_ref, s2_ref,
                               xtile_ref, *, K, stride, TH, W_out, C_in, Cp,
                               H_out, mask_rows):
    t = pl.program_id(1)
    TH_s = TH * stride
    HB = xb_ref.shape[1]

    # Assemble the contiguous input row-slab (body + halo rows) in VMEM scratch.
    xtile_ref[0:TH_s, :, :] = xa_ref[0]
    xtile_ref[TH_s:TH_s + HB, :, :] = xb_ref[0]

    # Conv as K*K shifted-window matmuls accumulated in registers (f32).
    # Operands stay in their input dtype; MXU accumulates in f32.
    acc = jnp.zeros((TH * W_out, Cp), jnp.float32)
    for ki in range(K):
        for kj in range(K):
            if stride == 1:
                xs = xtile_ref[ki:ki + TH, kj:kj + W_out, :]
            else:
                xs = xtile_ref[pl.ds(ki, TH, stride), pl.ds(kj, W_out, stride), :]
            acc = acc + jnp.dot(xs.reshape(TH * W_out, C_in), w_ref[ki, kj],
                                preferred_element_type=jnp.float32)

    # Lane/sublane-dense store of the conv tile (flattened rows x width, Cpad lanes).
    y_ref[...] = acc.reshape(1, 1, TH * W_out, Cp).astype(y_ref.dtype)

    # Per-tile per-channel partial sums for the instance-norm statistics.
    if mask_rows:
        # Last row tile may contain rows >= H_out (zero-padded input region);
        # exclude them from the statistics.
        flat = jax.lax.broadcasted_iota(jnp.int32, (TH * W_out, 1), 0)
        valid = flat < (H_out - t * TH) * W_out
        av = jnp.where(valid, acc, 0.0)
    else:
        av = acc
    s1_ref[...] = jnp.sum(av, axis=0).reshape(1, 1, 1, Cp)
    s2_ref[...] = jnp.sum(av * av, axis=0).reshape(1, 1, 1, Cp)


# ---------------------------------------------------------------------------
# Kernel 2: per-channel affine normalization (+ optional ReLU), elementwise.
# ---------------------------------------------------------------------------
def _instnorm_affine_relu_kernel(y_ref, scale_ref, shift_ref, o_ref, *, relu):
    z = y_ref[...] * scale_ref[...] + shift_ref[...]
    if relu:
        z = jnp.maximum(z, 0.0)
    o_ref[...] = z.astype(o_ref.dtype)


def conv_layer_forward(x_nchw, weight_kkio, gamma, beta, *, kernel_size, stride,
                       relu=True, pad='SAME', eps=1e-5, tile_rows=8):
    """Mirrors ConvLayer.forward.

    x_nchw      : (N, C_in, H, W)        NCHW (as in PyTorch)
    weight_kkio : (K, K, C_in, C_out)    conv weight (bias=False)
    gamma, beta : (C_out,)               InstanceNorm2d affine parameters
    returns     : (N, C_out, H_out, W_out)  NCHW
    """
    assert pad in ('SAME', 'VALID', 'REFLECT')
    N, C_in, H, W = x_nchw.shape
    K = kernel_size
    C_out = weight_kkio.shape[-1]

    # NCHW -> NHWC (channel on the lane dim).
    x = jnp.transpose(x_nchw, (0, 2, 3, 1))

    # Module padding semantics (SAME: zero pad k//2, REFLECT: reflection pad k//2).
    # TODO(synk): zero-pad case could be folded into the kernel (masked edge taps)
    # to avoid one extra HBM copy of the input.
    p = K // 2
    if pad == 'SAME':
        x = jnp.pad(x, ((0, 0), (p, p), (p, p), (0, 0)))
    elif pad == 'REFLECT':
        x = jnp.pad(x, ((0, 0), (p, p), (p, p), (0, 0)), mode='reflect')
    H_c, W_c = x.shape[1], x.shape[2]
    H_out = (H_c - K) // stride + 1
    W_out = (W_c - K) // stride + 1

    # ---- tiling geometry -------------------------------------------------
    halo = max(K - stride, 0)
    HB = _round_up(max(halo, 1), 8)              # halo block rows (sublane multiple)
    step = HB // math.gcd(HB, stride)            # smallest TH with TH*stride % HB == 0
    TH = _round_up(max(1, min(tile_rows, H_out)), step)   # output rows per tile
    T = -(-H_out // TH)                          # row tiles per image
    H_out_pad = T * TH
    TH_s = TH * stride                           # input rows consumed per tile (body)

    Cp = _round_up(C_out, 128)                   # lane-dense (padded) channel dim
    W_in = _round_up(W_c, 8)
    H_in = H_out_pad * stride + HB               # covers body + halo of every tile
    PW = TH * W_out                              # flattened spatial size per tile

    # Zero padding on the bottom/right only feeds rows/cols that are masked out
    # of the statistics and cropped from the output.
    x = jnp.pad(x, ((0, 0), (0, H_in - H_c), (0, W_in - W_c), (0, 0)))
    wp = jnp.pad(weight_kkio, ((0, 0), (0, 0), (0, 0), (0, Cp - C_out)))
    gamma_p = jnp.pad(gamma.astype(jnp.float32), (0, Cp - C_out))
    beta_p = jnp.pad(beta.astype(jnp.float32), (0, Cp - C_out))

    conv_kernel = functools.partial(
        _conv_partial_stats_kernel, K=K, stride=stride, TH=TH, W_out=W_out,
        C_in=C_in, Cp=Cp, H_out=H_out, mask_rows=(H_out_pad != H_out))

    y_conv, s1, s2 = pl.pallas_call(
        conv_kernel,
        out_shape=(
            jax.ShapeDtypeStruct((N, T, PW, Cp), jnp.float32),   # conv output tiles
            jax.ShapeDtypeStruct((N, T, 1, Cp), jnp.float32),    # per-tile sum
            jax.ShapeDtypeStruct((N, T, 1, Cp), jnp.float32),    # per-tile sum of squares
        ),
        grid_spec=pltpu.PrefetchScalarGridSpec(
            num_scalar_prefetch=0,
            grid=(N, T),
            in_specs=[
                # body rows of the tile
                pl.BlockSpec((1, TH_s, W_in, C_in), lambda b, t: (b, t, 0, 0)),
                # halo rows (same array, next HB-row block)
                pl.BlockSpec((1, HB, W_in, C_in),
                             lambda b, t: (b, (t + 1) * (TH_s // HB), 0, 0)),
                # full weights, resident
                pl.BlockSpec((K, K, C_in, Cp), lambda b, t: (0, 0, 0, 0)),
            ],
            out_specs=[
                pl.BlockSpec((1, 1, PW, Cp), lambda b, t: (b, t, 0, 0)),
                pl.BlockSpec((1, 1, 1, Cp), lambda b, t: (b, t, 0, 0)),
                pl.BlockSpec((1, 1, 1, Cp), lambda b, t: (b, t, 0, 0)),
            ],
            scratch_shapes=[pltpu.VMEM((TH_s + HB, W_in, C_in), x.dtype)],
        ),
        compiler_params=pltpu.CompilerParams(
            dimension_semantics=("parallel", "parallel"),
            vmem_limit_bytes=32 * 1024 * 1024),
    )(x, x, wp)

    # Finalize instance-norm statistics (tiny (N, Cp) tensors; plain-JAX glue).
    P = H_out * W_out
    ssum = jnp.sum(s1[:, :, 0, :], axis=1)                  # (N, Cp)
    ssq = jnp.sum(s2[:, :, 0, :], axis=1)                   # (N, Cp)
    mean = ssum / P
    var = jnp.maximum(ssq / P - mean * mean, 0.0)           # biased variance
    rstd = jax.lax.rsqrt(var + eps)
    scale = (gamma_p[None, :] * rstd).reshape(N, 1, 1, Cp)
    shift = (beta_p[None, :] - mean * gamma_p[None, :] * rstd).reshape(N, 1, 1, Cp)

    norm_kernel = functools.partial(_instnorm_affine_relu_kernel, relu=relu)
    out_flat = pl.pallas_call(
        norm_kernel,
        out_shape=jax.ShapeDtypeStruct((N, T, PW, Cp), x_nchw.dtype),
        grid_spec=pltpu.PrefetchScalarGridSpec(
            num_scalar_prefetch=0,
            grid=(N, T),
            in_specs=[
                pl.BlockSpec((1, 1, PW, Cp), lambda b, t: (b, t, 0, 0)),
                pl.BlockSpec((1, 1, 1, Cp), lambda b, t: (b, 0, 0, 0)),
                pl.BlockSpec((1, 1, 1, Cp), lambda b, t: (b, 0, 0, 0)),
            ],
            out_specs=pl.BlockSpec((1, 1, PW, Cp), lambda b, t: (b, t, 0, 0)),
        ),
        compiler_params=pltpu.CompilerParams(
            dimension_semantics=("parallel", "parallel"),
            vmem_limit_bytes=32 * 1024 * 1024),
    )(y_conv, scale, shift)

    # (N, T, TH*W_out, Cp) -> (N, H_out_pad, W_out, Cp) -> crop -> NCHW.
    out = out_flat.reshape(N, H_out_pad, W_out, Cp)[:, :H_out, :, :C_out]
    return jnp.transpose(out, (0, 3, 1, 2))


# ---------------------------------------------------------------------------
# Plain-JAX reference for correctness checking.
# ---------------------------------------------------------------------------
def _reference_forward(x_nchw, weight_kkio, gamma, beta, *,
                       kernel_size, stride, relu, pad, eps=1e-5):
    K = kernel_size
    p = K // 2
    x = x_nchw
    if pad == 'SAME':
        x = jnp.pad(x, ((0, 0), (0, 0), (p, p), (p, p)))
    elif pad == 'REFLECT':
        x = jnp.pad(x, ((0, 0), (0, 0), (p, p), (p, p)), mode='reflect')
    w_oihw = jnp.transpose(weight_kkio, (3, 2, 0, 1))       # (C_out, C_in, K, K)
    y = jax.lax.conv_general_dilated(
        x.astype(jnp.float32), w_oihw.astype(jnp.float32),
        window_strides=(stride, stride), padding='VALID',
        dimension_numbers=('NCHW', 'OIHW', 'NCHW'))
    mean = jnp.mean(y, axis=(2, 3), keepdims=True)
    var = jnp.mean((y - mean) ** 2, axis=(2, 3), keepdims=True)
    y = (y - mean) * jax.lax.rsqrt(var + eps)
    y = y * gamma.reshape(1, -1, 1, 1) + beta.reshape(1, -1, 1, 1)
    if relu:
        y = jnp.maximum(y, 0.0)
    return y


if __name__ == "__main__":
    key = jax.random.PRNGKey(0)

    def run_case(N, C_in, H, W, C_out, K, stride, relu, pad, case_key):
        kx, kw, kg, kb = jax.random.split(case_key, 4)
        x = jax.random.normal(kx, (N, C_in, H, W), dtype=jnp.float32)
        fan_in = C_in * K * K
        w = jax.random.normal(kw, (K, K, C_in, C_out), dtype=jnp.float32) / jnp.sqrt(fan_in)
        g = 1.0 + 0.1 * jax.random.normal(kg, (C_out,), dtype=jnp.float32)
        b = 0.1 * jax.random.normal(kb, (C_out,), dtype=jnp.float32)
        out = conv_layer_forward(x, w, g, b, kernel_size=K, stride=stride,
                                 relu=relu, pad=pad)
        out = jax.block_until_ready(out)
        ref = _reference_forward(x, w, g, b, kernel_size=K, stride=stride,
                                 relu=relu, pad=pad)
        assert out.shape == ref.shape, (out.shape, ref.shape)
        err = float(jnp.max(jnp.abs(out - ref)))
        assert err < 2e-4, err

    k1, k2 = jax.random.split(key)
    # ConvLayer(4, 8, kernel_size=3, stride=1, relu=True, pad='SAME'), 16x16 input.
    run_case(2, 4, 16, 16, 8, 3, 1, True, 'SAME', k1)
    # ConvLayer(4, 8, kernel_size=3, stride=1, relu=False, pad='REFLECT'), 12x12 input
    # (H_out not a multiple of the row tile -> exercises the masked-stats path).
    run_case(2, 4, 12, 12, 8, 3, 1, False, 'REFLECT', k2)
    print("KERNEL_OK")
</pallas_src>

<mosaic_0001>
module attributes {stable_mosaic.version = 11 : i64} {
  func.func @_conv_partial_stats_kernel(%arg0: i32, %arg1: i32, %arg2: memref<1x8x24x4xf32, #tpu.memory_space<vmem>>, %arg3: memref<1x8x24x4xf32, #tpu.memory_space<vmem>>, %arg4: memref<3x3x4x128xf32, #tpu.memory_space<vmem>>, %arg5: memref<1x1x128x128xf32, #tpu.memory_space<vmem>>, %arg6: memref<1x1x1x128xf32, #tpu.memory_space<vmem>>, %arg7: memref<1x1x1x128xf32, #tpu.memory_space<vmem>>, %arg8: memref<16x24x4xf32, #tpu.memory_space<vmem>>) attributes {dimension_semantics = [#tpu.dimension_semantics<parallel>, #tpu.dimension_semantics<parallel>], iteration_bounds = array<i64: 2, 2>, scalar_prefetch = 0 : i64, scratch_operands = 1 : i64, tpu.core_type = #tpu.core_type<tc>, window_params = [{transform_indices = @transform_0, window_bounds = array<i64: 1, 8, 24, 4>}, {transform_indices = @transform_1, window_bounds = array<i64: 1, 8, 24, 4>}, {pipeline_mode = #tpu.pipeline_mode<synchronous>, transform_indices = @transform_2, window_bounds = array<i64: 3, 3, 4, 128>}, {transform_indices = @transform_3, window_bounds = array<i64: 1, 1, 128, 128>}, {transform_indices = @transform_4, window_bounds = array<i64: 1, 1, 1, 128>}, {transform_indices = @transform_5, window_bounds = array<i64: 1, 1, 1, 128>}]} {
    %c0 = arith.constant 0 : index
    %c0_0 = arith.constant 0 : index
    %c0_1 = arith.constant 0 : index
    %c0_2 = arith.constant 0 : index
    %0 = vector.load %arg2[%c0, %c0_0, %c0_1, %c0_2] : memref<1x8x24x4xf32, #tpu.memory_space<vmem>>, vector<1x8x24x4xf32>
    %1 = vector.shape_cast %0 : vector<1x8x24x4xf32> to vector<8x24x4xf32>
    %c0_3 = arith.constant 0 : index
    %c0_4 = arith.constant 0 : index
    %c0_5 = arith.constant 0 : index
    %2 = vector.load %arg8[%c0_3, %c0_4, %c0_5] : memref<16x24x4xf32, #tpu.memory_space<vmem>>, vector<8x24x4xf32>
    tpu.vector_store %arg8[%c0_3, %c0_4, %c0_5], %1 {strides = array<i32>} : memref<16x24x4xf32, #tpu.memory_space<vmem>>, vector<8x24x4xf32>,
    %c0_6 = arith.constant 0 : index
    %c0_7 = arith.constant 0 : index
    %c0_8 = arith.constant 0 : index
    %c0_9 = arith.constant 0 : index
    %3 = vector.load %arg3[%c0_6, %c0_7, %c0_8, %c0_9] : memref<1x8x24x4xf32, #tpu.memory_space<vmem>>, vector<1x8x24x4xf32>
    %4 = vector.shape_cast %3 : vector<1x8x24x4xf32> to vector<8x24x4xf32>
    %c8 = arith.constant 8 : index
    %c0_10 = arith.constant 0 : index
    %c0_11 = arith.constant 0 : index
    %5 = vector.load %arg8[%c8, %c0_10, %c0_11] : memref<16x24x4xf32, #tpu.memory_space<vmem>>, vector<8x24x4xf32>
    tpu.vector_store %arg8[%c8, %c0_10, %c0_11], %4 {strides = array<i32>} : memref<16x24x4xf32, #tpu.memory_space<vmem>>, vector<8x24x4xf32>,
    %cst = arith.constant 0.000000e+00 : f32
    %6 = vector.broadcast %cst : f32 to vector<128x128xf32>
    %c0_12 = arith.constant 0 : index
    %c0_13 = arith.constant 0 : index
    %c0_14 = arith.constant 0 : index
    %7 = vector.load %arg8[%c0_12, %c0_13, %c0_14] : memref<16x24x4xf32, #tpu.memory_space<vmem>>, vector<8x16x4xf32>
    %8 = vector.shape_cast %7 : vector<8x16x4xf32> to vector<128x4xf32>
    %c0_15 = arith.constant 0 : index
    %c0_16 = arith.constant 0 : index
    %c0_17 = arith.constant 0 : index
    %c0_18 = arith.constant 0 : index
    %9 = vector.load %arg4[%c0_15, %c0_16, %c0_17, %c0_18] : memref<3x3x4x128xf32, #tpu.memory_space<vmem>>, vector<1x1x4x128xf32>
    %10 = vector.shape_cast %9 : vector<1x1x4x128xf32> to vector<4x128xf32>
    %cst_19 = arith.constant dense<0.000000e+00> : vector<128x128xf32>
    %11 = tpu.matmul %8, %10, %cst_19 {dimension_numbers = #tpu.dot_dimension_numbers<[1], [0], [0], [1], [0, 0, 1, 1], [], []>} : vector<128x4xf32>, vector<4x128xf32>, vector<128x128xf32> -> vector<128x128xf32>
    %12 = arith.addf %6, %11 : vector<128x128xf32>
    %c0_20 = arith.constant 0 : index
    %c1 = arith.constant 1 : index
    %c0_21 = arith.constant 0 : index
    %13 = vector.load %arg8[%c0_20, %c1, %c0_21] : memref<16x24x4xf32, #tpu.memory_space<vmem>>, vector<8x16x4xf32>
    %14 = vector.shape_cast %13 : vector<8x16x4xf32> to vector<128x4xf32>
    %c0_22 = arith.constant 0 : index
    %c1_23 = arith.constant 1 : index
    %c0_24 = arith.constant 0 : index
    %c0_25 = arith.constant 0 : index
    %15 = vector.load %arg4[%c0_22, %c1_23, %c0_24, %c0_25] : memref<3x3x4x128xf32, #tpu.memory_space<vmem>>, vector<1x1x4x128xf32>
    %16 = vector.shape_cast %15 : vector<1x1x4x128xf32> to vector<4x128xf32>
    %cst_26 = arith.constant dense<0.000000e+00> : vector<128x128xf32>
    %17 = tpu.matmul %14, %16, %cst_26 {dimension_numbers = #tpu.dot_dimension_numbers<[1], [0], [0], [1], [0, 0, 1, 1], [], []>} : vector<128x4xf32>, vector<4x128xf32>, vector<128x128xf32> -> vector<128x128xf32>
    %18 = arith.addf %12, %17 : vector<128x128xf32>
    %c0_27 = arith.constant 0 : index
    %c2 = arith.constant 2 : index
    %c0_28 = arith.constant 0 : index
    %19 = vector.load %arg8[%c0_27, %c2, %c0_28] : memref<16x24x4xf32, #tpu.memory_space<vmem>>, vector<8x16x4xf32>
    %20 = vector.shape_cast %19 : vector<8x16x4xf32> to vector<128x4xf32>
    %c0_29 = arith.constant 0 : index
    %c2_30 = arith.constant 2 : index
    %c0_31 = arith.constant 0 : index
    %c0_32 = arith.constant 0 : index
    %21 = vector.load %arg4[%c0_29, %c2_30, %c0_31, %c0_32] : memref<3x3x4x128xf32, #tpu.memory_space<vmem>>, vector<1x1x4x128xf32>
    %22 = vector.shape_cast %21 : vector<1x1x4x128xf32> to vector<4x128xf32>
    %cst_33 = arith.constant dense<0.000000e+00> : vector<128x128xf32>
    %23 = tpu.matmul %20, %22, %cst_33 {dimension_numbers = #tpu.dot_dimension_numbers<[1], [0], [0], [1], [0, 0, 1, 1], [], []>} : vector<128x4xf32>, vector<4x128xf32>, vector<128x128xf32> -> vector<128x128xf32>
    %24 = arith.addf %18, %23 : vector<128x128xf32>
    %c1_34 = arith.constant 1 : index
    %c0_35 = arith.constant 0 : index
    %c0_36 = arith.constant 0 : index
    %25 = vector.load %arg8[%c1_34, %c0_35, %c0_36] : memref<16x24x4xf32, #tpu.memory_space<vmem>>, vector<8x16x4xf32>
    %26 = vector.shape_cast %25 : vector<8x16x4xf32> to vector<128x4xf32>
    %c1_37 = arith.constant 1 : index
    %c0_38 = arith.constant 0 : index
    %c0_39 = arith.constant 0 : index
    %c0_40 = arith.constant 0 : index
    %27 = vector.load %arg4[%c1_37, %c0_38, %c0_39, %c0_40] : memref<3x3x4x128xf32, #tpu.memory_space<vmem>>, vector<1x1x4x128xf32>
    %28 = vector.shape_cast %27 : vector<1x1x4x128xf32> to vector<4x128xf32>
    %cst_41 = arith.constant dense<0.000000e+00> : vector<128x128xf32>
    %29 = tpu.matmul %26, %28, %cst_41 {dimension_numbers = #tpu.dot_dimension_numbers<[1], [0], [0], [1], [0, 0, 1, 1], [], []>} : vector<128x4xf32>, vector<4x128xf32>, vector<128x128xf32> -> vector<128x128xf32>
    %30 = arith.addf %24, %29 : vector<128x128xf32>
    %c1_42 = arith.constant 1 : index
    %c1_43 = arith.constant 1 : index
    %c0_44 = arith.constant 0 : index
    %31 = vector.load %arg8[%c1_42, %c1_43, %c0_44] : memref<16x24x4xf32, #tpu.memory_space<vmem>>, vector<8x16x4xf32>
    %32 = vector.shape_cast %31 : vector<8x16x4xf32> to vector<128x4xf32>
    %c1_45 = arith.constant 1 : index
    %c1_46 = arith.constant 1 : index
    %c0_47 = arith.constant 0 : index
    %c0_48 = arith.constant 0 : index
    %33 = vector.load %arg4[%c1_45, %c1_46, %c0_47, %c0_48] : memref<3x3x4x128xf32, #tpu.memory_space<vmem>>, vector<1x1x4x128xf32>
    %34 = vector.shape_cast %33 : vector<1x1x4x128xf32> to vector<4x128xf32>
    %cst_49 = arith.constant dense<0.000000e+00> : vector<128x128xf32>
    %35 = tpu.matmul %32, %34, %cst_49 {dimension_numbers = #tpu.dot_dimension_numbers<[1], [0], [0], [1], [0, 0, 1, 1], [], []>} : vector<128x4xf32>, vector<4x128xf32>, vector<128x128xf32> -> vector<128x128xf32>
    %36 = arith.addf %30, %35 : vector<128x128xf32>
    %c1_50 = arith.constant 1 : index
    %c2_51 = arith.constant 2 : index
    %c0_52 = arith.constant 0 : index
    %37 = vector.load %arg8[%c1_50, %c2_51, %c0_52] : memref<16x24x4xf32, #tpu.memory_space<vmem>>, vector<8x16x4xf32>
    %38 = vector.shape_cast %37 : vector<8x16x4xf32> to vector<128x4xf32>
    %c1_53 = arith.constant 1 : index
    %c2_54 = arith.constant 2 : index
    %c0_55 = arith.constant 0 : index
    %c0_56 = arith.constant 0 : index
    %39 = vector.load %arg4[%c1_53, %c2_54, %c0_55, %c0_56] : memref<3x3x4x128xf32, #tpu.memory_space<vmem>>, vector<1x1x4x128xf32>
    %40 = vector.shape_cast %39 : vector<1x1x4x128xf32> to vector<4x128xf32>
    %cst_57 = arith.constant dense<0.000000e+00> : vector<128x128xf32>
    %41 = tpu.matmul %38, %40, %cst_57 {dimension_numbers = #tpu.dot_dimension_numbers<[1], [0], [0], [1], [0, 0, 1, 1], [], []>} : vector<128x4xf32>, vector<4x128xf32>, vector<128x128xf32> -> vector<128x128xf32>
    %42 = arith.addf %36, %41 : vector<128x128xf32>
    %c2_58 = arith.constant 2 : index
    %c0_59 = arith.constant 0 : index
    %c0_60 = arith.constant 0 : index
    %43 = vector.load %arg8[%c2_58, %c0_59, %c0_60] : memref<16x24x4xf32, #tpu.memory_space<vmem>>, vector<8x16x4xf32>
    %44 = vector.shape_cast %43 : vector<8x16x4xf32> to vector<128x4xf32>
    %c2_61 = arith.constant 2 : index
    %c0_62 = arith.constant 0 : index
    %c0_63 = arith.constant 0 : index
    %c0_64 = arith.constant 0 : index
    %45 = vector.load %arg4[%c2_61, %c0_62, %c0_63, %c0_64] : memref<3x3x4x128xf32, #tpu.memory_space<vmem>>, vector<1x1x4x128xf32>
    %46 = vector.shape_cast %45 : vector<1x1x4x128xf32> to vector<4x128xf32>
    %cst_65 = arith.constant dense<0.000000e+00> : vector<128x128xf32>
    %47 = tpu.matmul %44, %46, %cst_65 {dimension_numbers = #tpu.dot_dimension_numbers<[1], [0], [0], [1], [0, 0, 1, 1], [], []>} : vector<128x4xf32>, vector<4x128xf32>, vector<128x128xf32> -> vector<128x128xf32>
    %48 = arith.addf %42, %47 : vector<128x128xf32>
    %c2_66 = arith.constant 2 : index
    %c1_67 = arith.constant 1 : index
    %c0_68 = arith.constant 0 : index
    %49 = vector.load %arg8[%c2_66, %c1_67, %c0_68] : memref<16x24x4xf32, #tpu.memory_space<vmem>>, vector<8x16x4xf32>
    %50 = vector.shape_cast %49 : vector<8x16x4xf32> to vector<128x4xf32>
    %c2_69 = arith.constant 2 : index
    %c1_70 = arith.constant 1 : index
    %c0_71 = arith.constant 0 : index
    %c0_72 = arith.constant 0 : index
    %51 = vector.load %arg4[%c2_69, %c1_70, %c0_71, %c0_72] : memref<3x3x4x128xf32, #tpu.memory_space<vmem>>, vector<1x1x4x128xf32>
    %52 = vector.shape_cast %51 : vector<1x1x4x128xf32> to vector<4x128xf32>
    %cst_73 = arith.constant dense<0.000000e+00> : vector<128x128xf32>
    %53 = tpu.matmul %50, %52, %cst_73 {dimension_numbers = #tpu.dot_dimension_numbers<[1], [0], [0], [1], [0, 0, 1, 1], [], []>} : vector<128x4xf32>, vector<4x128xf32>, vector<128x128xf32> -> vector<128x128xf32>
    %54 = arith.addf %48, %53 : vector<128x128xf32>
    %c2_74 = arith.constant 2 : index
    %c2_75 = arith.constant 2 : index
    %c0_76 = arith.constant 0 : index
    %55 = vector.load %arg8[%c2_74, %c2_75, %c0_76] : memref<16x24x4xf32, #tpu.memory_space<vmem>>, vector<8x16x4xf32>
    %56 = vector.shape_cast %55 : vector<8x16x4xf32> to vector<128x4xf32>
    %c2_77 = arith.constant 2 : index
    %c2_78 = arith.constant 2 : index
    %c0_79 = arith.constant 0 : index
    %c0_80 = arith.constant 0 : index
    %57 = vector.load %arg4[%c2_77, %c2_78, %c0_79, %c0_80] : memref<3x3x4x128xf32, #tpu.memory_space<vmem>>, vector<1x1x4x128xf32>
    %58 = vector.shape_cast %57 : vector<1x1x4x128xf32> to vector<4x128xf32>
    %cst_81 = arith.constant dense<0.000000e+00> : vector<128x128xf32>
    %59 = tpu.matmul %56, %58, %cst_81 {dimension_numbers = #tpu.dot_dimension_numbers<[1], [0], [0], [1], [0, 0, 1, 1], [], []>} : vector<128x4xf32>, vector<4x128xf32>, vector<128x128xf32> -> vector<128x128xf32>
    %60 = arith.addf %54, %59 : vector<128x128xf32>
    %61 = vector.shape_cast %60 : vector<128x128xf32> to vector<1x1x128x128xf32>
    %c0_82 = arith.constant 0 : index
    %c0_83 = arith.constant 0 : index
    %c0_84 = arith.constant 0 : index
    %c0_85 = arith.constant 0 : index
    %62 = vector.load %arg5[%c0_82, %c0_83, %c0_84, %c0_85] : memref<1x1x128x128xf32, #tpu.memory_space<vmem>>, vector<1x1x128x128xf32>
    tpu.vector_store %arg5[%c0_82, %c0_83, %c0_84, %c0_85], %61 {strides = array<i32>} : memref<1x1x128x128xf32, #tpu.memory_space<vmem>>, vector<1x1x128x128xf32>,
    %cst_86 = arith.constant dense<0.000000e+00> : vector<128xf32>
    %63 = vector.multi_reduction <add>, %60, %cst_86 [0] : vector<128x128xf32> to vector<128xf32>
    %64 = vector.shape_cast %63 : vector<128xf32> to vector<1x1x1x128xf32>
    %c0_87 = arith.constant 0 : index
    %c0_88 = arith.constant 0 : index
    %c0_89 = arith.constant 0 : index
    %c0_90 = arith.constant 0 : index
    %65 = vector.load %arg6[%c0_87, %c0_88, %c0_89, %c0_90] : memref<1x1x1x128xf32, #tpu.memory_space<vmem>>, vector<1x1x1x128xf32>
    tpu.vector_store %arg6[%c0_87, %c0_88, %c0_89, %c0_90], %64 {strides = array<i32>} : memref<1x1x1x128xf32, #tpu.memory_space<vmem>>, vector<1x1x1x128xf32>,
    %66 = arith.mulf %60, %60 : vector<128x128xf32>
    %cst_91 = arith.constant dense<0.000000e+00> : vector<128xf32>
    %67 = vector.multi_reduction <add>, %66, %cst_91 [0] : vector<128x128xf32> to vector<128xf32>
    %68 = vector.shape_cast %67 : vector<128xf32> to vector<1x1x1x128xf32>
    %c0_92 = arith.constant 0 : index
    %c0_93 = arith.constant 0 : index
    %c0_94 = arith.constant 0 : index
    %c0_95 = arith.constant 0 : index
    %69 = vector.load %arg7[%c0_92, %c0_93, %c0_94, %c0_95] : memref<1x1x1x128xf32, #tpu.memory_space<vmem>>, vector<1x1x1x128xf32>
    tpu.vector_store %arg7[%c0_92, %c0_93, %c0_94, %c0_95], %68 {strides = array<i32>} : memref<1x1x1x128xf32, #tpu.memory_space<vmem>>, vector<1x1x1x128xf32>,
    return
  }
  func.func @transform_0(%arg0: i32, %arg1: i32) -> (i32, i32, i32, i32) {
    %c0_i32 = arith.constant 0 : i32
    %c0_i32_0 = arith.constant 0 : i32
    %c0_i32_1 = arith.constant 0 : i32
    return %arg0, %arg1, %c0_i32, %c0_i32_0 : i32, i32, i32, i32
  }
  func.func @transform_1(%arg0: i32, %arg1: i32) -> (i32, i32, i32, i32) {
    %c1_i32 = arith.constant 1 : i32
    %0 = arith.addi %arg1, %c1_i32 : i32
    %c1_i32_0 = arith.constant 1 : i32
    %1 = arith.muli %0, %c1_i32_0 : i32
    %c0_i32 = arith.constant 0 : i32
    %c0_i32_1 = arith.constant 0 : i32
    %c0_i32_2 = arith.constant 0 : i32
    return %arg0, %1, %c0_i32, %c0_i32_1 : i32, i32, i32, i32
  }
  func.func @transform_2(%arg0: i32, %arg1: i32) -> (i32, i32, i32, i32) {
    %c0_i32 = arith.constant 0 : i32
    %c0_i32_0 = arith.constant 0 : i32
    %c0_i32_1 = arith.constant 0 : i32
    %c0_i32_2 = arith.constant 0 : i32
    %c0_i32_3 = arith.constant 0 : i32
    return %c0_i32, %c0_i32_0, %c0_i32_1, %c0_i32_2 : i32, i32, i32, i32
  }
  func.func @transform_3(%arg0: i32, %arg1: i32) -> (i32, i32, i32, i32) {
    %c0_i32 = arith.constant 0 : i32
    %c0_i32_0 = arith.constant 0 : i32
    %c0_i32_1 = arith.constant 0 : i32
    return %arg0, %arg1, %c0_i32, %c0_i32_0 : i32, i32, i32, i32
  }
  func.func @transform_4(%arg0: i32, %arg1: i32) -> (i32, i32, i32, i32) {
    %c0_i32 = arith.constant 0 : i32
    %c0_i32_0 = arith.constant 0 : i32
    %c0_i32_1 = arith.constant 0 : i32
    return %arg0, %arg1, %c0_i32, %c0_i32_0 : i32, i32, i32, i32
  }
  func.func @transform_5(%arg0: i32, %arg1: i32) -> (i32, i32, i32, i32) {
    %c0_i32 = arith.constant 0 : i32
    %c0_i32_0 = arith.constant 0 : i32
    %c0_i32_1 = arith.constant 0 : i32
    return %arg0, %arg1, %c0_i32, %c0_i32_0 : i32, i32, i32, i32
  }
}

</mosaic_0001>

<llo_original>
// kernel: tpu_custom_call.1
$region0: #{tpu_custom_call.1}
  #allocation0 [shape = 'u32[]', space=smem, size = 0x4, offset = 0x4, fixed_abs, tag = 'smem constant byte address 0x4 - core index']
  #allocation1 [shape = 'u32[144,128]{1,0:T(1,128)}', space=vmem, size = 0x12000, scoped, tag = 'internal scratch']
  #allocation2 [shape = 'f32[16,24,4]{2,1,0:T(8,128)}', space=vmem, size = 0x30000, scoped, tag = 'scratch operand']
  %s0 = inlined_call_operand.vmem [shape: f32[2,24,24,4], index: 0, kind: input, shape index: {}]
  %s1 = inlined_call_operand.vmem [shape: f32[2,24,24,4], index: 1, kind: input, shape index: {}]
  %s2 = inlined_call_operand.vmem [shape: f32[3,3,4,128], index: 2, kind: input, shape index: {}]
  %s3 = inlined_call_operand.hbm [shape: f32[2,2,128,128], index: 3, kind: output, shape index: {0}]
  %s4 = inlined_call_operand.hbm [shape: f32[2,2,1,128], index: 4, kind: output, shape index: {1}]
  %s5 = inlined_call_operand.hbm [shape: f32[2,2,1,128], index: 5, kind: output, shape index: {2}]
  %6 = xla_tuple %s3, %s4, %s5
  %s7 = sld [smem:[#allocation0]]
  $region61: #{tpu_custom_call.1} parent=0
    _
  %s9 = ssub.s32 1, %s7
  %s10 = scalar_select 0, %s9, %s7
  $region1: #{tpu_custom_call.1} parent=0
    #allocation3 [shape = 'u8[131072]{0}', space=vmem, size = 0x20000, scoped, tag = 'output window, operand 0']
    #allocation4 [shape = 's32[2]{0}', space=sflag, size = 0x8, scoped, tag = 'scoped memory for tpu_custom_call.1']
    #allocation5 [shape = 'u8[1024]{0}', space=vmem, size = 0x400, scoped, tag = 'output window, operand 1']
    #allocation6 [shape = 's32[2]{0}', space=sflag, size = 0x8, scoped, tag = 'scoped memory for tpu_custom_call.1']
    #allocation7 [shape = 'u8[1024]{0}', space=vmem, size = 0x400, scoped, tag = 'output window, operand 2']
    %11 = vsyncpa [#allocation4], 0
    %s12 = scalar_lea.sflag [#allocation4], 1
    %13 = vsyncpa %s12, 0
    %14 = vsyncpa [#allocation6], 0
    %s15 = scalar_lea.sflag [#allocation6], 1
    %16 = vsyncpa %s15, 0
    loop: start=0, step=1, limit=6
    $region2: #{tpu_custom_call.1} parent=1 // loop_pre_header
      _
    $region3: #{tpu_custom_call.1} parent=1 // loop_header
      %s18 = sphi 0, %s22
      %p19 = scmp.ge.s32.totalorder %s18, 6
      %s25 = sphi 0, %s37
      %s26 = sphi 0, %s33
      %s27 = sphi 0, %s25
      %s28 = sphi 0, %s26
      %s29 = sphi 0, %s27
      %s30 = sphi 0, %s28
      %s42 = sphi 0, %s44
      %s45 = sphi 0, %s42
      %s46 = sphi 0, %s45
      %s62 = sphi 0, %s46
      %s72 = sphi 0, %s74
      %s75 = sphi 0, %s72
      %s76 = sphi 0, %s75
      %s92 = sphi 0, %s76
      %s96 = sphi 0, %s96
      %s98 = sphi 0, %s96
      %s99 = sphi 0, %s98
      %s113 = sphi 0, %s99
      %s121 = sphi 0, %s123
      %s124 = sphi 0, %s121
      %s125 = sphi 0, %s124
      %s141 = sphi 0, %s125
      %s149 = sphi 0, %s151
      %s152 = sphi 0, %s149
      %s153 = sphi 0, %s152
      %s169 = sphi 0, %s153
      %s177 = sphi 0, %s179
      %s180 = sphi 0, %s177
      %s181 = sphi 0, %s180
      %s197 = sphi 0, %s181
    $region4: #{tpu_custom_call.1} parent=1 // loop_header_branch
      %21 = sbr.rel (%p19) target = $region8
    $region5: #{tpu_custom_call.1} parent=1 // loop_body
      %s23 = ssub.s32 %s18, 1
      %s24 = ssub.s32 %s18, 2
      %s31 = sadd.s32 1, %s26
      %p32 = scmp.ge.s32.totalorder %s31, 2
      %s33 = scalar_select %p32, 0, %s31
      %s34 = sadd.s32 1, %s25
      %s35 = scalar_select %p32, %s34, %s25
      %p36 = scmp.ge.s32.totalorder %s35, 2
      %s37 = scalar_select %p36, 0, %s35
      %s38 = ssub.s32 %s25, %s37
      %s39 = ssub.s32 %s26, %s33
      %s40 = sor.u32 %s38, %s39
      %p41 = scmp.eq.s32.totalorder %s40, 0
      %s43 = sadd.s32 %s42, 1
      %s44 = scalar_select %p41, %s42, %s43
      %p47 = pneg %p41
      %p48 = scmp.eq.s32.totalorder %s18, 3
      %p49 = por %p47, %p48
      %p50 = scmp.ne.s32.totalorder %s42, %s45
      %p51 = scmp.eq.s32.totalorder %s18, 0
      %p52 = por %p50, %p51
      %p53 = scmp.ne.s32.totalorder %s42, %s45
      %p54 = scmp.eq.s32.totalorder %s23, 3
      %p55 = por %p53, %p54
      %p56 = scmp.ne.s32.totalorder %s45, %s46
      %p57 = scmp.eq.s32.totalorder %s23, 0
      %p58 = por %p56, %p57
      %p59 = scmp.ne.s32.totalorder %s45, %s46
      %p60 = scmp.eq.s32.totalorder %s24, 3
      %p61 = por %p59, %p60
      %p63 = scmp.ne.s32.totalorder %s46, %s62
      %p64 = scmp.eq.s32.totalorder %s24, 0
      %p65 = por %p63, %p64
      %s66 = sadd.s32 %s26, 1
      %s67 = sadd.s32 %s33, 1
      %s68 = ssub.s32 %s25, %s37
      %s69 = ssub.s32 %s66, %s67
      %s70 = sor.u32 %s68, %s69
      %p71 = scmp.eq.s32.totalorder %s70, 0
      %s73 = sadd.s32 %s72, 1
      %s74 = scalar_select %p71, %s72, %s73
      %p77 = pneg %p71
      %p78 = scmp.eq.s32.totalorder %s18, 3
      %p79 = por %p77, %p78
      %p80 = scmp.ne.s32.totalorder %s72, %s75
      %p81 = scmp.eq.s32.totalorder %s18, 0
      %p82 = por %p80, %p81
      %p83 = scmp.ne.s32.totalorder %s72, %s75
      %p84 = scmp.eq.s32.totalorder %s23, 3
      %p85 = por %p83, %p84
      %p86 = scmp.ne.s32.totalorder %s75, %s76
      %p87 = scmp.eq.s32.totalorder %s23, 0
      %p88 = por %p86, %p87
      %p89 = scmp.ne.s32.totalorder %s75, %s76
      %p90 = scmp.eq.s32.totalorder %s24, 3
      %p91 = por %p89, %p90
      %p93 = scmp.ne.s32.totalorder %s76, %s92
      %p94 = scmp.eq.s32.totalorder %s24, 0
      %p95 = por %p93, %p94
      %s97 = sadd.s32 %s96, 1
      %p100 = scmp.eq.s32.totalorder %s18, 3
      %p101 = scmp.ne.s32.totalorder %s96, %s98
      %p102 = scmp.eq.s32.totalorder %s18, 0
      %p103 = por %p101, %p102
      %p104 = scmp.ne.s32.totalorder %s96, %s98
      %p105 = scmp.eq.s32.totalorder %s23, 3
      %p106 = por %p104, %p105
      %p107 = scmp.ne.s32.totalorder %s98, %s99
      %p108 = scmp.eq.s32.totalorder %s23, 0
      %p109 = por %p107, %p108
      %p110 = scmp.ne.s32.totalorder %s98, %s99
      %p111 = scmp.eq.s32.totalorder %s24, 3
      %p112 = por %p110, %p111
      %p114 = scmp.ne.s32.totalorder %s99, %s113
      %p115 = scmp.eq.s32.totalorder %s24, 0
      %p116 = por %p114, %p115
      %s117 = ssub.s32 %s25, %s37
      %s118 = ssub.s32 %s26, %s33
      %s119 = sor.u32 %s117, %s118
      %p120 = scmp.eq.s32.totalorder %s119, 0
      %s122 = sadd.s32 %s121, 1
      %s123 = scalar_select %p120, %s121, %s122
      %p126 = pneg %p120
      %p127 = scmp.eq.s32.totalorder %s18, 3
      %p128 = por %p126, %p127
      %p129 = scmp.ne.s32.totalorder %s121, %s124
      %p130 = scmp.eq.s32.totalorder %s18, 0
      %p131 = por %p129, %p130
      %p132 = scmp.ne.s32.totalorder %s121, %s124
      %p133 = scmp.eq.s32.totalorder %s23, 3
      %p134 = por %p132, %p133
      %p135 = scmp.ne.s32.totalorder %s124, %s125
      %p136 = scmp.eq.s32.totalorder %s23, 0
      %p137 = por %p135, %p136
      %p138 = scmp.ne.s32.totalorder %s124, %s125
      %p139 = scmp.eq.s32.totalorder %s24, 3
      %p140 = por %p138, %p139
      %p142 = scmp.ne.s32.totalorder %s125, %s141
      %p143 = scmp.eq.s32.totalorder %s24, 0
      %p144 = por %p142, %p143
      %s145 = ssub.s32 %s25, %s37
      %s146 = ssub.s32 %s26, %s33
      %s147 = sor.u32 %s145, %s146
      %p148 = scmp.eq.s32.totalorder %s147, 0
      %s150 = sadd.s32 %s149, 1
      %s151 = scalar_select %p148, %s149, %s150
      %p154 = pneg %p148
      %p155 = scmp.eq.s32.totalorder %s18, 3
      %p156 = por %p154, %p155
      %p157 = scmp.ne.s32.totalorder %s149, %s152
      %p158 = scmp.eq.s32.totalorder %s18, 0
      %p159 = por %p157, %p158
      %p160 = scmp.ne.s32.totalorder %s149, %s152
      %p161 = scmp.eq.s32.totalorder %s23, 3
      %p162 = por %p160, %p161
      %p163 = scmp.ne.s32.totalorder %s152, %s153
      %p164 = scmp.eq.s32.totalorder %s23, 0
      %p165 = por %p163, %p164
      %p166 = scmp.ne.s32.totalorder %s152, %s153
      %p167 = scmp.eq.s32.totalorder %s24, 3
      %p168 = por %p166, %p167
      %p170 = scmp.ne.s32.totalorder %s153, %s169
      %p171 = scmp.eq.s32.totalorder %s24, 0
      %p172 = por %p170, %p171
      %s173 = ssub.s32 %s25, %s37
      %s174 = ssub.s32 %s26, %s33
      %s175 = sor.u32 %s173, %s174
      %p176 = scmp.eq.s32.totalorder %s175, 0
      %s178 = sadd.s32 %s177, 1
      %s179 = scalar_select %p176, %s177, %s178
      %p182 = pneg %p176
      %p183 = scmp.eq.s32.totalorder %s18, 3
      %p184 = por %p182, %p183
      %p185 = scmp.ne.s32.totalorder %s177, %s180
      %p186 = scmp.eq.s32.totalorder %s18, 0
      %p187 = por %p185, %p186
      %p188 = scmp.ne.s32.totalorder %s177, %s180
      %p189 = scmp.eq.s32.totalorder %s23, 3
      %p190 = por %p188, %p189
      %p191 = scmp.ne.s32.totalorder %s180, %s181
      %p192 = scmp.eq.s32.totalorder %s23, 0
      %p193 = por %p191, %p192
      %p194 = scmp.ne.s32.totalorder %s180, %s181
      %p195 = scmp.eq.s32.totalorder %s24, 3
      %p196 = por %p194, %p195
      %p198 = scmp.ne.s32.totalorder %s181, %s197
      %p199 = scmp.eq.s32.totalorder %s24, 0
      %p200 = por %p198, %p199
      %p201 = scmp.le.s32.totalorder 1, %s18
      %p202 = scmp.lt.s32.totalorder %s18, 5
      %p203 = pnand %p201, %p202
      %p204 = pneg %p203
      // Predicated region
      $region9: #{tpu_custom_call.1} parent=5 // pred_check
        _
      $region10: #{tpu_custom_call.1} parent=5 // pred_check_branch
        %206 = sbr.rel (%p203) target = $region12
      $region11: #{tpu_custom_call.1} parent=5 // pred_region
        %s207 = ssub.s32 %s18, 1
        // Predicated region
        $region13: #{tpu_custom_call.1} parent=11 // pred_check
          %p208 = pneg %p109
        $region14: #{tpu_custom_call.1} parent=11 // pred_check_branch
          %210 = sbr.rel (%p208) target = $region16
        $region15: #{tpu_custom_call.1} parent=11 // pred_region
          _
        $region16: #{tpu_custom_call.1} parent=11 // pred_fallthru
          _
      $region12: #{tpu_custom_call.1} parent=5 // pred_fallthru
        _
      %p211 = scmp.lt.s32.totalorder %s18, 4
      // Predicated region
      $region17: #{tpu_custom_call.1} parent=5 // pred_check
        %p212 = pneg %p211
      $region18: #{tpu_custom_call.1} parent=5 // pred_check_branch
        %214 = sbr.rel (%p212) target = $region20
      $region19: #{tpu_custom_call.1} parent=5 // pred_region
        // Predicated region
        $region21: #{tpu_custom_call.1} parent=19 // pred_check
          %p215 = pneg %p52
        $region22: #{tpu_custom_call.1} parent=19 // pred_check_branch
          %217 = sbr.rel (%p215) target = $region24
        $region23: #{tpu_custom_call.1} parent=19 // pred_region
          %s218 = smul.u32 8, %s26
          %p219 = scmp.lt.s32.totalorder %s25, 1
          %s220 = scalar_select %p219, %s25, 1
          %p221 = scmp.lt.s32.totalorder %s218, 23
          %s222 = scalar_select %p221, %s218, 23
          %s223 = smul.addr %s222, 3
          %s224 = smul.addr %s220, 72
          %s225 = sadd.s32 %s223, %s224
          %s226 = smul.addr %s225, 8
          %s227 = scalar_lea.vmem %s0, %s226
          %s228 = smul.u32 8, %s26
        $region24: #{tpu_custom_call.1} parent=19 // pred_fallthru
          _
        // Predicated region
        $region25: #{tpu_custom_call.1} parent=19 // pred_check
          %p229 = pneg %p82
        $region26: #{tpu_custom_call.1} parent=19 // pred_check_branch
          %231 = sbr.rel (%p229) target = $region28
        $region27: #{tpu_custom_call.1} parent=19 // pred_region
          %s232 = sadd.s32 %s26, 1
          %s233 = smul.u32 8, %s232
          %p234 = scmp.lt.s32.totalorder %s25, 1
          %s235 = scalar_select %p234, %s25, 1
          %p236 = scmp.lt.s32.totalorder %s233, 23
          %s237 = scalar_select %p236, %s233, 23
          %s238 = smul.addr %s237, 3
          %s239 = smul.addr %s235, 72
          %s240 = sadd.s32 %s238, %s239
          %s241 = smul.addr %s240, 8
          %s242 = scalar_lea.vmem %s1, %s241
          %s243 = sadd.s32 %s26, 1
          %s244 = smul.u32 8, %s243
        $region28: #{tpu_custom_call.1} parent=19 // pred_fallthru
          _
      $region20: #{tpu_custom_call.1} parent=5 // pred_fallthru
        _
      %p245 = scmp.le.s32.totalorder 1, %s18
      %p246 = scmp.lt.s32.totalorder %s18, 5
      %p247 = pnand %p245, %p246
      %p248 = pneg %p247
      // Predicated region
      $region29: #{tpu_custom_call.1} parent=5 // pred_check
        _
      $region30: #{tpu_custom_call.1} parent=5 // pred_check_branch
        %250 = sbr.rel (%p247) target = $region32
      $region31: #{tpu_custom_call.1} parent=5 // pred_region
        %s251 = ssub.s32 %s18, 1
        %s252 = smul.u32 8, %s28
        %p253 = scmp.lt.s32.totalorder %s27, 1
        %s254 = scalar_select %p253, %s27, 1
        %p255 = scmp.lt.s32.totalorder %s252, 23
        %s256 = scalar_select %p255, %s252, 23
        %s257 = smul.addr %s256, 3
        %s258 = smul.addr %s254, 72
        %s259 = sadd.s32 %s257, %s258
        %s260 = smul.addr %s259, 8
        %s261 = scalar_lea.vmem %s0, %s260
        %p262 = pneg %p58
        %p263 = pneg %p55
        %s264 = sadd.s32 %s28, 1
        %s265 = smul.u32 8, %s264
        %p266 = scmp.lt.s32.totalorder %s27, 1
        %s267 = scalar_select %p266, %s27, 1
        %p268 = scmp.lt.s32.totalorder %s265, 23
        %s269 = scalar_select %p268, %s265, 23
        %s270 = smul.addr %s269, 3
        %s271 = smul.addr %s267, 72
        %s272 = sadd.s32 %s270, %s271
        %s273 = smul.addr %s272, 8
        %s274 = scalar_lea.vmem %s1, %s273
        %p275 = pneg %p88
        %p276 = pneg %p85
        %p277 = pneg %p109
        %p278 = pneg %p106
        %p279 = pneg %p137
        %p280 = pneg %p134
        %s281 = sand.u32 %s124, 1
        %s282 = scalar_lea.sflag [#allocation4], %s281
        %s283 = sand.u32 %s124, 1
        %s284 = smul.addr %s283, 128
        %s285 = scalar_lea.vmem [#allocation3], %s284
        %p286 = pneg %p165
        %p287 = pneg %p162
        %s288 = sand.u32 %s23, 1
        %s289 = scalar_lea.sflag [#allocation6], %s288
        %s290 = sand.u32 %s152, 1
        %s291 = scalar_lea.vmem [#allocation5], %s290
        %p292 = pneg %p193
        %p293 = pneg %p190
        %s294 = sand.u32 %s23, 1
        %s295 = scalar_lea.sflag [#allocation6], %s294
        %s296 = sand.u32 %s180, 1
        %s297 = scalar_lea.vmem [#allocation7], %s296
        %s298 = smul.u32 8, %s28
        %p299 = scmp.lt.s32.totalorder %s27, 1
        %s300 = scalar_select %p299, %s27, 1
        %p301 = scmp.lt.s32.totalorder %s298, 23
        %s302 = scalar_select %p301, %s298, 23
        %s303 = smul.addr %s302, 3
        %s304 = smul.addr %s300, 72
        %s305 = sadd.s32 %s303, %s304
        %s306 = smul.addr %s305, 8
        %s307 = scalar_lea.vmem %s0, %s306
        %s308 = smul.u32 8, %s28
        %s309 = sadd.s32 %s28, 1
        %s310 = smul.u32 8, %s309
        %p311 = scmp.lt.s32.totalorder %s27, 1
        %s312 = scalar_select %p311, %s27, 1
        %p313 = scmp.lt.s32.totalorder %s310, 23
        %s314 = scalar_select %p313, %s310, 23
        %s315 = smul.addr %s314, 3
        %s316 = smul.addr %s312, 72
        %s317 = sadd.s32 %s315, %s316
        %s318 = smul.addr %s317, 8
        %s319 = scalar_lea.vmem %s1, %s318
        %s320 = sadd.s32 %s28, 1
        %s321 = smul.u32 8, %s320
        %v322 = vld [vmem:[%s307] sm:$0xff]
        %v323 = vld [vmem:[%s307 + $0x8] sm:$0xff]
        %v324 = vld [vmem:[%s307 + $0x10] sm:$0xff]
        %v325 = vld [vmem:[%s307 + $0x18] sm:$0xff]
        %v326 = vld [vmem:[%s307 + $0x20] sm:$0xff]
        %v327 = vld [vmem:[%s307 + $0x28] sm:$0xff]
        %v328 = vld [vmem:[%s307 + $0x30] sm:$0xff]
        %v329 = vld [vmem:[%s307 + $0x38] sm:$0xff]
        %v330 = vld [vmem:[%s307 + $0x40] sm:$0xff]
        %v331 = vld [vmem:[%s307 + $0x48] sm:$0xff]
        %v332 = vld [vmem:[%s307 + $0x50] sm:$0xff]
        %v333 = vld [vmem:[%s307 + $0x58] sm:$0xff]
        %v334 = vld [vmem:[%s307 + $0x60] sm:$0xff]
        %v335 = vld [vmem:[%s307 + $0x68] sm:$0xff]
        %v336 = vld [vmem:[%s307 + $0x70] sm:$0xff]
        %v337 = vld [vmem:[%s307 + $0x78] sm:$0xff]
        %v338 = vld [vmem:[%s307 + $0x80] sm:$0xff]
        %v339 = vld [vmem:[%s307 + $0x88] sm:$0xff]
        %v340 = vld [vmem:[%s307 + $0x90] sm:$0xff]
        %v341 = vld [vmem:[%s307 + $0x98] sm:$0xff]
        %v342 = vld [vmem:[%s307 + $0xa0] sm:$0xff]
        %v343 = vld [vmem:[%s307 + $0xa8] sm:$0xff]
        %v344 = vld [vmem:[%s307 + $0xb0] sm:$0xff]
        %v345 = vld [vmem:[%s307 + $0xb8] sm:$0xff]
        %vm346 = vcmask 31744
        %347 = vst.msk [vmem:[#allocation2] sm:$0xff] %vm346, %v322
        %348 = vst.msk [vmem:[#allocation2 + $0x8] sm:$0xff] %vm346, %v323
        %349 = vst.msk [vmem:[#allocation2 + $0x10] sm:$0xff] %vm346, %v324
        %350 = vst.msk [vmem:[#allocation2 + $0x18] sm:$0xff] %vm346, %v325
        %351 = vst.msk [vmem:[#allocation2 + $0x20] sm:$0xff] %vm346, %v326
        %352 = vst.msk [vmem:[#allocation2 + $0x28] sm:$0xff] %vm346, %v327
        %353 = vst.msk [vmem:[#allocation2 + $0x30] sm:$0xff] %vm346, %v328
        %354 = vst.msk [vmem:[#allocation2 + $0x38] sm:$0xff] %vm346, %v329
        %355 = vst.msk [vmem:[#allocation2 + $0x40] sm:$0xff] %vm346, %v330
        %356 = vst.msk [vmem:[#allocation2 + $0x48] sm:$0xff] %vm346, %v331
        %357 = vst.msk [vmem:[#allocation2 + $0x50] sm:$0xff] %vm346, %v332
        %358 = vst.msk [vmem:[#allocation2 + $0x58] sm:$0xff] %vm346, %v333
        %359 = vst.msk [vmem:[#allocation2 + $0x60] sm:$0xff] %vm346, %v334
        %360 = vst.msk [vmem:[#allocation2 + $0x68] sm:$0xff] %vm346, %v335
        %361 = vst.msk [vmem:[#allocation2 + $0x70] sm:$0xff] %vm346, %v336
        %362 = vst.msk [vmem:[#allocation2 + $0x78] sm:$0xff] %vm346, %v337
        %363 = vst.msk [vmem:[#allocation2 + $0x80] sm:$0xff] %vm346, %v338
        %364 = vst.msk [vmem:[#allocation2 + $0x88] sm:$0xff] %vm346, %v339
        %365 = vst.msk [vmem:[#allocation2 + $0x90] sm:$0xff] %vm346, %v340
        %366 = vst.msk [vmem:[#allocation2 + $0x98] sm:$0xff] %vm346, %v341
        %367 = vst.msk [vmem:[#allocation2 + $0xa0] sm:$0xff] %vm346, %v342
        %368 = vst.msk [vmem:[#allocation2 + $0xa8] sm:$0xff] %vm346, %v343
        %369 = vst.msk [vmem:[#allocation2 + $0xb0] sm:$0xff] %vm346, %v344
        %370 = vst.msk [vmem:[#allocation2 + $0xb8] sm:$0xff] %vm346, %v345
        %v371 = vld [vmem:[%s319] sm:$0xff]
        %v372 = vld [vmem:[%s319 + $0x8] sm:$0xff]
        %v373 = vld [vmem:[%s319 + $0x10] sm:$0xff]
        %v374 = vld [vmem:[%s319 + $0x18] sm:$0xff]
        %v375 = vld [vmem:[%s319 + $0x20] sm:$0xff]
        %v376 = vld [vmem:[%s319 + $0x28] sm:$0xff]
        %v377 = vld [vmem:[%s319 + $0x30] sm:$0xff]
        %v378 = vld [vmem:[%s319 + $0x38] sm:$0xff]
        %v379 = vld [vmem:[%s319 + $0x40] sm:$0xff]
        %v380 = vld [vmem:[%s319 + $0x48] sm:$0xff]
        %v381 = vld [vmem:[%s319 + $0x50] sm:$0xff]
        %v382 = vld [vmem:[%s319 + $0x58] sm:$0xff]
        %v383 = vld [vmem:[%s319 + $0x60] sm:$0xff]
        %v384 = vld [vmem:[%s319 + $0x68] sm:$0xff]
        %v385 = vld [vmem:[%s319 + $0x70] sm:$0xff]
        %v386 = vld [vmem:[%s319 + $0x78] sm:$0xff]
        %v387 = vld [vmem:[%s319 + $0x80] sm:$0xff]
        %v388 = vld [vmem:[%s319 + $0x88] sm:$0xff]
        %v389 = vld [vmem:[%s319 + $0x90] sm:$0xff]
        %v390 = vld [vmem:[%s319 + $0x98] sm:$0xff]
        %v391 = vld [vmem:[%s319 + $0xa0] sm:$0xff]
        %v392 = vld [vmem:[%s319 + $0xa8] sm:$0xff]
        %v393 = vld [vmem:[%s319 + $0xb0] sm:$0xff]
        %v394 = vld [vmem:[%s319 + $0xb8] sm:$0xff]
        %s395 = scalar_lea.vmem [#allocation2], 192
        %396 = vst.msk [vmem:[%s395] sm:$0xff] %vm346, %v371
        %397 = vst.msk [vmem:[%s395 + $0x8] sm:$0xff] %vm346, %v372
        %398 = vst.msk [vmem:[%s395 + $0x10] sm:$0xff] %vm346, %v373
        %399 = vst.msk [vmem:[%s395 + $0x18] sm:$0xff] %vm346, %v374
        %400 = vst.msk [vmem:[%s395 + $0x20] sm:$0xff] %vm346, %v375
        %401 = vst.msk [vmem:[%s395 + $0x28] sm:$0xff] %vm346, %v376
        %402 = vst.msk [vmem:[%s395 + $0x30] sm:$0xff] %vm346, %v377
        %403 = vst.msk [vmem:[%s395 + $0x38] sm:$0xff] %vm346, %v378
        %404 = vst.msk [vmem:[%s395 + $0x40] sm:$0xff] %vm346, %v379
        %405 = vst.msk [vmem:[%s395 + $0x48] sm:$0xff] %vm346, %v380
        %406 = vst.msk [vmem:[%s395 + $0x50] sm:$0xff] %vm346, %v381
        %407 = vst.msk [vmem:[%s395 + $0x58] sm:$0xff] %vm346, %v382
        %408 = vst.msk [vmem:[%s395 + $0x60] sm:$0xff] %vm346, %v383
        %409 = vst.msk [vmem:[%s395 + $0x68] sm:$0xff] %vm346, %v384
        %410 = vst.msk [vmem:[%s395 + $0x70] sm:$0xff] %vm346, %v385
        %411 = vst.msk [vmem:[%s395 + $0x78] sm:$0xff] %vm346, %v386
        %412 = vst.msk [vmem:[%s395 + $0x80] sm:$0xff] %vm346, %v387
        %413 = vst.msk [vmem:[%s395 + $0x88] sm:$0xff] %vm346, %v388
        %414 = vst.msk [vmem:[%s395 + $0x90] sm:$0xff] %vm346, %v389
        %415 = vst.msk [vmem:[%s395 + $0x98] sm:$0xff] %vm346, %v390
        %416 = vst.msk [vmem:[%s395 + $0xa0] sm:$0xff] %vm346, %v391
        %417 = vst.msk [vmem:[%s395 + $0xa8] sm:$0xff] %vm346, %v392
        %418 = vst.msk [vmem:[%s395 + $0xb0] sm:$0xff] %vm346, %v393
        %419 = vst.msk [vmem:[%s395 + $0xb8] sm:$0xff] %vm346, %v394
        %v420 = vld [vmem:[#allocation2] sm:$0xff]
        %v421 = vld [vmem:[#allocation2 + $0x8] sm:$0xff]
        %v422 = vld [vmem:[#allocation2 + $0x18] sm:$0xff]
        %v423 = vld [vmem:[#allocation2 + $0x20] sm:$0xff]
        %v424 = vld [vmem:[#allocation2 + $0x30] sm:$0xff]
        %v425 = vld [vmem:[#allocation2 + $0x38] sm:$0xff]
        %v426 = vld [vmem:[#allocation2 + $0x48] sm:$0xff]
        %v427 = vld [vmem:[#allocation2 + $0x50] sm:$0xff]
        %v428 = vld [vmem:[#allocation2 + $0x60] sm:$0xff]
        %v429 = vld [vmem:[#allocation2 + $0x68] sm:$0xff]
        %v430 = vld [vmem:[#allocation2 + $0x78] sm:$0xff]
        %v431 = vld [vmem:[#allocation2 + $0x80] sm:$0xff]
        %v432 = vld [vmem:[#allocation2 + $0x90] sm:$0xff]
        %v433 = vld [vmem:[#allocation2 + $0x98] sm:$0xff]
        %v434 = vld [vmem:[#allocation2 + $0xa8] sm:$0xff]
        %v435 = vld [vmem:[#allocation2 + $0xb0] sm:$0xff]
        %v436 = vld [vmem:[%s2] sm:$0xf]
        %v437 = vld [vmem:[#allocation2 + $0x1] sm:$0xff]
        %v438 = vld [vmem:[#allocation2 + $0x9] sm:$0xff]
        %v439 = vld [vmem:[#allocation2 + $0x19] sm:$0xff]
        %v440 = vld [vmem:[#allocation2 + $0x21] sm:$0xff]
        %v441 = vld [vmem:[#allocation2 + $0x31] sm:$0xff]
        %v442 = vld [vmem:[#allocation2 + $0x39] sm:$0xff]
        %v443 = vld [vmem:[#allocation2 + $0x49] sm:$0xff]
        %v444 = vld [vmem:[#allocation2 + $0x51] sm:$0xff]
        %v445 = vld [vmem:[#allocation2 + $0x61] sm:$0xff]
        %v446 = vld [vmem:[#allocation2 + $0x69] sm:$0xff]
        %v447 = vld [vmem:[#allocation2 + $0x79] sm:$0xff]
        %v448 = vld [vmem:[#allocation2 + $0x81] sm:$0xff]
        %v449 = vld [vmem:[#allocation2 + $0x91] sm:$0xff]
        %v450 = vld [vmem:[#allocation2 + $0x99] sm:$0xff]
        %v451 = vld [vmem:[#allocation2 + $0xa9] sm:$0xff]
        %v452 = vld [vmem:[#allocation2 + $0xb1] sm:$0xff]
        %s453 = scalar_lea.vmem %s2, 4
        %v454 = vld [vmem:[%s453] sm:$0xf]
        %v456 = vsel %vm346, %v437, 0
        %v459 = vsel %vm346, %v438, 0
        %v462 = vsel %vm346, %v439, 0
        %v465 = vsel %vm346, %v440, 0
        %v468 = vsel %vm346, %v441, 0
        %v471 = vsel %vm346, %v442, 0
        %v474 = vsel %vm346, %v443, 0
        %v477 = vsel %vm346, %v444, 0
        %v480 = vsel %vm346, %v445, 0
        %v483 = vsel %vm346, %v446, 0
        %v486 = vsel %vm346, %v447, 0
        %v489 = vsel %vm346, %v448, 0
        %v492 = vsel %vm346, %v449, 0
        %v495 = vsel %vm346, %v450, 0
        %v498 = vsel %vm346, %v451, 0
        %v501 = vsel %vm346, %v452, 0
        %vm503 = vcmask 1043456
        %v505 = vsel %vm503, %v454, 0
        %507 = vmatprep.subr.mxu0 0.0
        %508 = vmatpush1.msra.mxu0 %v505
        %509 = vmatprep.subr.mxu0 0.0
        %510 = vmatpush1.msra.mxu0 0.0
        %511 = vmatprep.subr.mxu0 0.0
        %512 = vmatpush1.msra.mxu0 0.0
        %513 = vmatprep.subr.mxu0 0.0
        %514 = vmatpush1.msra.mxu0 0.0
        %515 = vmatprep.subr.mxu0 0.0
        %516 = vmatpush1.msra.mxu0 0.0
        %517 = vmatprep.subr.mxu0 0.0
        %518 = vmatpush1.msra.mxu0 0.0
        %519 = vmatprep.subr.mxu0 0.0
        %520 = vmatpush1.msra.mxu0 0.0
        %521 = vmatprep.subr.mxu0 0.0
        %522 = vmatpush1.msra.mxu0 0.0
        %523 = vmatprep.subr.mxu0 0.0
        %524 = vmatpush1.msra.mxu0 0.0
        %525 = vmatprep.subr.mxu0 0.0
        %526 = vmatpush1.msra.mxu0 0.0
        %527 = vmatprep.subr.mxu0 0.0
        %528 = vmatpush1.msra.mxu0 0.0
        %529 = vmatprep.subr.mxu0 0.0
        %530 = vmatpush1.msra.mxu0 0.0
        %531 = vmatprep.subr.mxu0 0.0
        %532 = vmatpush1.msra.mxu0 0.0
        %533 = vmatprep.subr.mxu0 0.0
        %534 = vmatpush1.msra.mxu0 0.0
        %535 = vmatprep.subr.mxu0 0.0
        %536 = vmatpush1.msra.mxu0 0.0
        %537 = vmatprep.subr.mxu0 0.0
        %538 = vmatpush1.msra.mxu0 0.0
        %539 = vmatprep.subr.mxu0 0.0
        %540 = vmatpush1.msra.mxu0 0.0
        %541 = vmatprep.subr.mxu0 0.0
        %542 = vmatpush1.msra.mxu0 0.0
        %543 = vmatprep.subr.mxu0 0.0
        %544 = vmatpush1.msra.mxu0 0.0
        %545 = vmatprep.subr.mxu0 0.0
        %546 = vmatpush1.msra.mxu0 0.0
        %547 = vmatprep.subr.mxu0 0.0
        %548 = vmatpush1.msra.mxu0 0.0
        %549 = vmatprep.subr.mxu0 0.0
        %550 = vmatpush1.msra.mxu0 0.0
        %551 = vmatprep.subr.mxu0 0.0
        %552 = vmatpush1.msra.mxu0 0.0
        %553 = vmatprep.subr.mxu0 0.0
        %554 = vmatpush1.msra.mxu0 0.0
        %555 = vmatprep.subr.mxu0 0.0
        %556 = vmatpush1.msra.mxu0 0.0
        %557 = vmatprep.subr.mxu0 0.0
        %558 = vmatpush1.msra.mxu0 0.0
        %559 = vmatprep.subr.mxu0 0.0
        %560 = vmatpush1.msra.mxu0 0.0
        %561 = vmatprep.subr.mxu0 0.0
        %562 = vmatpush1.msra.mxu0 0.0
        %563 = vmatprep.subr.mxu0 0.0
        %564 = vmatpush1.msra.mxu0 0.0
        %565 = vmatprep.subr.mxu0 0.0
        %566 = vmatpush1.msra.mxu0 0.0
        %567 = vmatprep.subr.mxu0 0.0
        %568 = vmatpush1.msra.mxu0 0.0
        %569 = vmatprep.subr.mxu0 0.0
        %570 = vmatpush1.msra.mxu0 0.0
        %571 = vmatprep.mubr.f32.mxu0 0.0
        %572 = vmatmul.mubr.f32.gmra.mrb[0].mxu0 %v456
        %v573 = vpop.f32.mrb[0].mxu0
        %v574 = vadd.f32 0.0, %v573
        %v575 = vpop.f32.mrb[0].mxu0
        %576 = vmatprep.mubr.f32.mxu0 0.0
        %577 = vmatmul.mubr.f32.gmra.mrb[0].mxu0 %v459
        %v578 = vpop.f32.mrb[0].mxu0
        %v579 = vadd.f32 0.0, %v578
        %v580 = vpop.f32.mrb[0].mxu0
        %581 = vmatprep.mubr.f32.mxu0 0.0
        %582 = vmatmul.mubr.f32.gmra.mrb[0].mxu0 %v462
        %v583 = vpop.f32.mrb[0].mxu0
        %v584 = vadd.f32 0.0, %v583
        %v585 = vpop.f32.mrb[0].mxu0
        %586 = vmatprep.mubr.f32.mxu0 0.0
        %587 = vmatmul.mubr.f32.gmra.mrb[0].mxu0 %v465
        %v588 = vpop.f32.mrb[0].mxu0
        %v589 = vadd.f32 0.0, %v588
        %v590 = vpop.f32.mrb[0].mxu0
        %591 = vmatprep.mubr.f32.mxu0 0.0
        %592 = vmatmul.mubr.f32.gmra.mrb[0].mxu0 %v468
        %v593 = vpop.f32.mrb[0].mxu0
        %v594 = vadd.f32 0.0, %v593
        %v595 = vpop.f32.mrb[0].mxu0
        %596 = vmatprep.mubr.f32.mxu0 0.0
        %597 = vmatmul.mubr.f32.gmra.mrb[0].mxu0 %v471
        %v598 = vpop.f32.mrb[0].mxu0
        %v599 = vadd.f32 0.0, %v598
        %v600 = vpop.f32.mrb[0].mxu0
        %601 = vmatprep.mubr.f32.mxu0 0.0
        %602 = vmatmul.mubr.f32.gmra.mrb[0].mxu0 %v474
        %v603 = vpop.f32.mrb[0].mxu0
        %v604 = vadd.f32 0.0, %v603
        %v605 = vpop.f32.mrb[0].mxu0
        %606 = vmatprep.mubr.f32.mxu0 0.0
        %607 = vmatmul.mubr.f32.gmra.mrb[0].mxu0 %v477
        %v608 = vpop.f32.mrb[0].mxu0
        %v609 = vadd.f32 0.0, %v608
        %v610 = vpop.f32.mrb[0].mxu0
        %611 = vmatprep.mubr.f32.mxu0 0.0
        %612 = vmatmul.mubr.f32.gmra.mrb[0].mxu0 %v480
        %v613 = vpop.f32.mrb[0].mxu0
        %v614 = vadd.f32 0.0, %v613
        %v615 = vpop.f32.mrb[0].mxu0
        %616 = vmatprep.mubr.f32.mxu0 0.0
        %617 = vmatmul.mubr.f32.gmra.mrb[0].mxu0 %v483
        %v618 = vpop.f32.mrb[0].mxu0
        %v619 = vadd.f32 0.0, %v618
        %v620 = vpop.f32.mrb[0].mxu0
        %621 = vmatprep.mubr.f32.mxu0 0.0
        %622 = vmatmul.mubr.f32.gmra.mrb[0].mxu0 %v486
        %v623 = vpop.f32.mrb[0].mxu0
        %v624 = vadd.f32 0.0, %v623
        %v625 = vpop.f32.mrb[0].mxu0
        %626 = vmatprep.mubr.f32.mxu0 0.0
        %627 = vmatmul.mubr.f32.gmra.mrb[0].mxu0 %v489
        %v628 = vpop.f32.mrb[0].mxu0
        %v629 = vadd.f32 0.0, %v628
        %v630 = vpop.f32.mrb[0].mxu0
        %631 = vmatprep.mubr.f32.mxu0 0.0
        %632 = vmatmul.mubr.f32.gmra.mrb[0].mxu0 %v492
        %v633 = vpop.f32.mrb[0].mxu0
        %v634 = vadd.f32 0.0, %v633
        %v635 = vpop.f32.mrb[0].mxu0
        %636 = vmatprep.mubr.f32.mxu0 0.0
        %637 = vmatmul.mubr.f32.gmra.mrb[0].mxu0 %v495
        %v638 = vpop.f32.mrb[0].mxu0
        %v639 = vadd.f32 0.0, %v638
        %v640 = vpop.f32.mrb[0].mxu0
        %641 = vmatprep.mubr.f32.mxu0 0.0
        %642 = vmatmul.mubr.f32.gmra.mrb[0].mxu0 %v498
        %v643 = vpop.f32.mrb[0].mxu0
        %v644 = vadd.f32 0.0, %v643
        %v645 = vpop.f32.mrb[0].mxu0
        %646 = vmatprep.mubr.f32.mxu0 0.0
        %647 = vmatmul.mubr.f32.gmra.mrb[0].mxu0 %v501
        %v648 = vpop.f32.mrb[0].mxu0
        %v649 = vadd.f32 0.0, %v648
        %v650 = vpop.f32.mrb[0].mxu0
        %651 = vdwg.mxu0
        %v653 = vsel %vm346, %v420, 0
        %v656 = vsel %vm346, %v421, 0
        %v659 = vsel %vm346, %v422, 0
        %v662 = vsel %vm346, %v423, 0
        %v665 = vsel %vm346, %v424, 0
        %v668 = vsel %vm346, %v425, 0
        %v671 = vsel %vm346, %v426, 0
        %v674 = vsel %vm346, %v427, 0
        %v677 = vsel %vm346, %v428, 0
        %v680 = vsel %vm346, %v429, 0
        %v683 = vsel %vm346, %v430, 0
        %v686 = vsel %vm346, %v431, 0
        %v689 = vsel %vm346, %v432, 0
        %v692 = vsel %vm346, %v433, 0
        %v695 = vsel %vm346, %v434, 0
        %v698 = vsel %vm346, %v435, 0
        %v701 = vsel %vm503, %v436, 0
        %703 = vmatprep.subr.mxu0 0.0
        %704 = vmatpush1.msra.mxu0 %v701
        %705 = vmatprep.subr.mxu0 0.0
        %706 = vmatpush1.msra.mxu0 0.0
        %707 = vmatprep.subr.mxu0 0.0
        %708 = vmatpush1.msra.mxu0 0.0
        %709 = vmatprep.subr.mxu0 0.0
        %710 = vmatpush1.msra.mxu0 0.0
        %711 = vmatprep.subr.mxu0 0.0
        %712 = vmatpush1.msra.mxu0 0.0
        %713 = vmatprep.subr.mxu0 0.0
        %714 = vmatpush1.msra.mxu0 0.0
        %715 = vmatprep.subr.mxu0 0.0
        %716 = vmatpush1.msra.mxu0 0.0
        %717 = vmatprep.subr.mxu0 0.0
        %718 = vmatpush1.msra.mxu0 0.0
        %719 = vmatprep.subr.mxu0 0.0
        %720 = vmatpush1.msra.mxu0 0.0
        %721 = vmatprep.subr.mxu0 0.0
        %722 = vmatpush1.msra.mxu0 0.0
        %723 = vmatprep.subr.mxu0 0.0
        %724 = vmatpush1.msra.mxu0 0.0
        %725 = vmatprep.subr.mxu0 0.0
        %726 = vmatpush1.msra.mxu0 0.0
        %727 = vmatprep.subr.mxu0 0.0
        %728 = vmatpush1.msra.mxu0 0.0
        %729 = vmatprep.subr.mxu0 0.0
        %730 = vmatpush1.msra.mxu0 0.0
        %731 = vmatprep.subr.mxu0 0.0
        %732 = vmatpush1.msra.mxu0 0.0
        %733 = vmatprep.subr.mxu0 0.0
        %734 = vmatpush1.msra.mxu0 0.0
        %735 = vmatprep.subr.mxu0 0.0
        %736 = vmatpush1.msra.mxu0 0.0
        %737 = vmatprep.subr.mxu0 0.0
        %738 = vmatpush1.msra.mxu0 0.0
        %739 = vmatprep.subr.mxu0 0.0
        %740 = vmatpush1.msra.mxu0 0.0
        %741 = vmatprep.subr.mxu0 0.0
        %742 = vmatpush1.msra.mxu0 0.0
        %743 = vmatprep.subr.mxu0 0.0
        %744 = vmatpush1.msra.mxu0 0.0
        %745 = vmatprep.subr.mxu0 0.0
        %746 = vmatpush1.msra.mxu0 0.0
        %747 = vmatprep.subr.mxu0 0.0
        %748 = vmatpush1.msra.mxu0 0.0
        %749 = vmatprep.subr.mxu0 0.0
        %750 = vmatpush1.msra.mxu0 0.0
        %751 = vmatprep.subr.mxu0 0.0
        %752 = vmatpush1.msra.mxu0 0.0
        %753 = vmatprep.subr.mxu0 0.0
        %754 = vmatpush1.msra.mxu0 0.0
        %755 = vmatprep.subr.mxu0 0.0
        %756 = vmatpush1.msra.mxu0 0.0
        %757 = vmatprep.subr.mxu0 0.0
        %758 = vmatpush1.msra.mxu0 0.0
        %759 = vmatprep.subr.mxu0 0.0
        %760 = vmatpush1.msra.mxu0 0.0
        %761 = vmatprep.subr.mxu0 0.0
        %762 = vmatpush1.msra.mxu0 0.0
        %763 = vmatprep.subr.mxu0 0.0
        %764 = vmatpush1.msra.mxu0 0.0
        %765 = vmatprep.subr.mxu0 0.0
        %766 = vmatpush1.msra.mxu0 0.0
        %767 = vmatprep.mubr.f32.mxu0 0.0
        %768 = vmatmul.mubr.f32.gmra.mrb[0].mxu0 %v653
        %v769 = vpop.f32.mrb[0].mxu0
        %v770 = vadd.f32 %v574, %v769
        %v771 = vpop.f32.mrb[0].mxu0
        %772 = vmatprep.mubr.f32.mxu0 0.0
        %773 = vmatmul.mubr.f32.gmra.mrb[0].mxu0 %v656
        %v774 = vpop.f32.mrb[0].mxu0
        %v775 = vadd.f32 %v579, %v774
        %v776 = vpop.f32.mrb[0].mxu0
        %777 = vmatprep.mubr.f32.mxu0 0.0
        %778 = vmatmul.mubr.f32.gmra.mrb[0].mxu0 %v659
        %v779 = vpop.f32.mrb[0].mxu0
        %v780 = vadd.f32 %v584, %v779
        %v781 = vpop.f32.mrb[0].mxu0
        %782 = vmatprep.mubr.f32.mxu0 0.0
        %783 = vmatmul.mubr.f32.gmra.mrb[0].mxu0 %v662
        %v784 = vpop.f32.mrb[0].mxu0
        %v785 = vadd.f32 %v589, %v784
        %v786 = vpop.f32.mrb[0].mxu0
        %787 = vmatprep.mubr.f32.mxu0 0.0
        %788 = vmatmul.mubr.f32.gmra.mrb[0].mxu0 %v665
        %v789 = vpop.f32.mrb[0].mxu0
        %v790 = vadd.f32 %v594, %v789
        %v791 = vpop.f32.mrb[0].mxu0
        %792 = vmatprep.mubr.f32.mxu0 0.0
        %793 = vmatmul.mubr.f32.gmra.mrb[0].mxu0 %v668
        %v794 = vpop.f32.mrb[0].mxu0
        %v795 = vadd.f32 %v599, %v794
        %v796 = vpop.f32.mrb[0].mxu0
        %797 = vmatprep.mubr.f32.mxu0 0.0
        %798 = vmatmul.mubr.f32.gmra.mrb[0].mxu0 %v671
        %v799 = vpop.f32.mrb[0].mxu0
        %v800 = vadd.f32 %v604, %v799
        %v801 = vpop.f32.mrb[0].mxu0
        %802 = vmatprep.mubr.f32.mxu0 0.0
        %803 = vmatmul.mubr.f32.gmra.mrb[0].mxu0 %v674
        %v804 = vpop.f32.mrb[0].mxu0
        %v805 = vadd.f32 %v609, %v804
        %v806 = vpop.f32.mrb[0].mxu0
        %807 = vmatprep.mubr.f32.mxu0 0.0
        %808 = vmatmul.mubr.f32.gmra.mrb[0].mxu0 %v677
        %v809 = vpop.f32.mrb[0].mxu0
        %v810 = vadd.f32 %v614, %v809
        %v811 = vpop.f32.mrb[0].mxu0
        %812 = vmatprep.mubr.f32.mxu0 0.0
        %813 = vmatmul.mubr.f32.gmra.mrb[0].mxu0 %v680
        %v814 = vpop.f32.mrb[0].mxu0
        %v815 = vadd.f32 %v619, %v814
        %v816 = vpop.f32.mrb[0].mxu0
        %817 = vmatprep.mubr.f32.mxu0 0.0
        %818 = vmatmul.mubr.f32.gmra.mrb[0].mxu0 %v683
        %v819 = vpop.f32.mrb[0].mxu0
        %v820 = vadd.f32 %v624, %v819
        %v821 = vpop.f32.mrb[0].mxu0
        %822 = vmatprep.mubr.f32.mxu0 0.0
        %823 = vmatmul.mubr.f32.gmra.mrb[0].mxu0 %v686
        %v824 = vpop.f32.mrb[0].mxu0
        %v825 = vadd.f32 %v629, %v824
        %v826 = vpop.f32.mrb[0].mxu0
        %827 = vmatprep.mubr.f32.mxu0 0.0
        %828 = vmatmul.mubr.f32.gmra.mrb[0].mxu0 %v689
        %v829 = vpop.f32.mrb[0].mxu0
        %v830 = vadd.f32 %v634, %v829
        %v831 = vpop.f32.mrb[0].mxu0
        %832 = vmatprep.mubr.f32.mxu0 0.0
        %833 = vmatmul.mubr.f32.gmra.mrb[0].mxu0 %v692
        %v834 = vpop.f32.mrb[0].mxu0
        %v835 = vadd.f32 %v639, %v834
        %v836 = vpop.f32.mrb[0].mxu0
        %837 = vmatprep.mubr.f32.mxu0 0.0
        %838 = vmatmul.mubr.f32.gmra.mrb[0].mxu0 %v695
        %v839 = vpop.f32.mrb[0].mxu0
        %v840 = vadd.f32 %v644, %v839
        %v841 = vpop.f32.mrb[0].mxu0
        %842 = vmatprep.mubr.f32.mxu0 0.0
        %843 = vmatmul.mubr.f32.gmra.mrb[0].mxu0 %v698
        %v844 = vpop.f32.mrb[0].mxu0
        %v845 = vadd.f32 %v649, %v844
        %v846 = vpop.f32.mrb[0].mxu0
        %847 = vdwg.mxu0
        %v848 = vld [vmem:[#allocation2 + $0x2] sm:$0xff]
        %v849 = vld [vmem:[#allocation2 + $0xa] sm:$0xff]
        %v850 = vld [vmem:[#allocation2 + $0x1a] sm:$0xff]
        %v851 = vld [vmem:[#allocation2 + $0x22] sm:$0xff]
        %v852 = vld [vmem:[#allocation2 + $0x32] sm:$0xff]
        %v853 = vld [vmem:[#allocation2 + $0x3a] sm:$0xff]
        %v854 = vld [vmem:[#allocation2 + $0x4a] sm:$0xff]
        %v855 = vld [vmem:[#allocation2 + $0x52] sm:$0xff]
        %v856 = vld [vmem:[#allocation2 + $0x62] sm:$0xff]
        %v857 = vld [vmem:[#allocation2 + $0x6a] sm:$0xff]
        %v858 = vld [vmem:[#allocation2 + $0x7a] sm:$0xff]
        %v859 = vld [vmem:[#allocation2 + $0x82] sm:$0xff]
        %v860 = vld [vmem:[#allocation2 + $0x92] sm:$0xff]
        %v861 = vld [vmem:[#allocation2 + $0x9a] sm:$0xff]
        %v862 = vld [vmem:[#allocation2 + $0xaa] sm:$0xff]
        %v863 = vld [vmem:[#allocation2 + $0xb2] sm:$0xff]
        %s864 = scalar_lea.vmem %s2, 8
        %v865 = vld [vmem:[%s864] sm:$0xf]
        %v867 = vsel %vm346, %v848, 0
        %v870 = vsel %vm346, %v849, 0
        %v873 = vsel %vm346, %v850, 0
        %v876 = vsel %vm346, %v851, 0
        %v879 = vsel %vm346, %v852, 0
        %v882 = vsel %vm346, %v853, 0
        %v885 = vsel %vm346, %v854, 0
        %v888 = vsel %vm346, %v855, 0
        %v891 = vsel %vm346, %v856, 0
        %v894 = vsel %vm346, %v857, 0
        %v897 = vsel %vm346, %v858, 0
        %v900 = vsel %vm346, %v859, 0
        %v903 = vsel %vm346, %v860, 0
        %v906 = vsel %vm346, %v861, 0
        %v909 = vsel %vm346, %v862, 0
        %v912 = vsel %vm346, %v863, 0
        %v915 = vsel %vm503, %v865, 0
        %917 = vmatprep.subr.mxu0 0.0
        %918 = vmatpush1.msra.mxu0 %v915
        %919 = vmatprep.subr.mxu0 0.0
        %920 = vmatpush1.msra.mxu0 0.0
        %921 = vmatprep.subr.mxu0 0.0
        %922 = vmatpush1.msra.mxu0 0.0
        %923 = vmatprep.subr.mxu0 0.0
        %924 = vmatpush1.msra.mxu0 0.0
        %925 = vmatprep.subr.mxu0 0.0
        %926 = vmatpush1.msra.mxu0 0.0
        %927 = vmatprep.subr.mxu0 0.0
        %928 = vmatpush1.msra.mxu0 0.0
        %929 = vmatprep.subr.mxu0 0.0
        %930 = vmatpush1.msra.mxu0 0.0
        %931 = vmatprep.subr.mxu0 0.0
        %932 = vmatpush1.msra.mxu0 0.0
        %933 = vmatprep.subr.mxu0 0.0
        %934 = vmatpush1.msra.mxu0 0.0
        %935 = vmatprep.subr.mxu0 0.0
        %936 = vmatpush1.msra.mxu0 0.0
        %937 = vmatprep.subr.mxu0 0.0
        %938 = vmatpush1.msra.mxu0 0.0
        %939 = vmatprep.subr.mxu0 0.0
        %940 = vmatpush1.msra.mxu0 0.0
        %941 = vmatprep.subr.mxu0 0.0
        %942 = vmatpush1.msra.mxu0 0.0
        %943 = vmatprep.subr.mxu0 0.0
        %944 = vmatpush1.msra.mxu0 0.0
        %945 = vmatprep.subr.mxu0 0.0
        %946 = vmatpush1.msra.mxu0 0.0
        %947 = vmatprep.subr.mxu0 0.0
        %948 = vmatpush1.msra.mxu0 0.0
        %949 = vmatprep.subr.mxu0 0.0
        %950 = vmatpush1.msra.mxu0 0.0
        %951 = vmatprep.subr.mxu0 0.0
        %952 = vmatpush1.msra.mxu0 0.0
        %953 = vmatprep.subr.mxu0 0.0
        %954 = vmatpush1.msra.mxu0 0.0
        %955 = vmatprep.subr.mxu0 0.0
        %956 = vmatpush1.msra.mxu0 0.0
        %957 = vmatprep.subr.mxu0 0.0
        %958 = vmatpush1.msra.mxu0 0.0
        %959 = vmatprep.subr.mxu0 0.0
        %960 = vmatpush1.msra.mxu0 0.0
        %961 = vmatprep.subr.mxu0 0.0
        %962 = vmatpush1.msra.mxu0 0.0
        %963 = vmatprep.subr.mxu0 0.0
        %964 = vmatpush1.msra.mxu0 0.0
        %965 = vmatprep.subr.mxu0 0.0
        %966 = vmatpush1.msra.mxu0 0.0
        %967 = vmatprep.subr.mxu0 0.0
        %968 = vmatpush1.msra.mxu0 0.0
        %969 = vmatprep.subr.mxu0 0.0
        %970 = vmatpush1.msra.mxu0 0.0
        %971 = vmatprep.subr.mxu0 0.0
        %972 = vmatpush1.msra.mxu0 0.0
        %973 = vmatprep.subr.mxu0 0.0
        %974 = vmatpush1.msra.mxu0 0.0
        %975 = vmatprep.subr.mxu0 0.0
        %976 = vmatpush1.msra.mxu0 0.0
        %977 = vmatprep.subr.mxu0 0.0
        %978 = vmatpush1.msra.mxu0 0.0
        %979 = vmatprep.subr.mxu0 0.0
        %980 = vmatpush1.msra.mxu0 0.0
        %981 = vmatprep.mubr.f32.mxu0 0.0
        %982 = vmatmul.mubr.f32.gmra.mrb[0].mxu0 %v867
        %v983 = vpop.f32.mrb[0].mxu0
        %v984 = vadd.f32 0.0, %v983
        %v985 = vpop.f32.mrb[0].mxu0
        %986 = vmatprep.mubr.f32.mxu0 0.0
        %987 = vmatmul.mubr.f32.gmra.mrb[0].mxu0 %v870
        %v988 = vpop.f32.mrb[0].mxu0
        %v989 = vadd.f32 0.0, %v988
        %v990 = vpop.f32.mrb[0].mxu0
        %991 = vmatprep.mubr.f32.mxu0 0.0
        %992 = vmatmul.mubr.f32.gmra.mrb[0].mxu0 %v873
        %v993 = vpop.f32.mrb[0].mxu0
        %v994 = vadd.f32 0.0, %v993
        %v995 = vpop.f32.mrb[0].mxu0
        %996 = vmatprep.mubr.f32.mxu0 0.0
        %997 = vmatmul.mubr.f32.gmra.mrb[0].mxu0 %v876
        %v998 = vpop.f32.mrb[0].mxu0
        %v999 = vadd.f32 0.0, %v998
        %v1000 = vpop.f32.mrb[0].mxu0
        %1001 = vmatprep.mubr.f32.mxu0 0.0
        %1002 = vmatmul.mubr.f32.gmra.mrb[0].mxu0 %v879
        %v1003 = vpop.f32.mrb[0].mxu0
        %v1004 = vadd.f32 0.0, %v1003
        %v1005 = vpop.f32.mrb[0].mxu0
        %1006 = vmatprep.mubr.f32.mxu0 0.0
        %1007 = vmatmul.mubr.f32.gmra.mrb[0].mxu0 %v882
        %v1008 = vpop.f32.mrb[0].mxu0
        %v1009 = vadd.f32 0.0, %v1008
        %v1010 = vpop.f32.mrb[0].mxu0
        %1011 = vmatprep.mubr.f32.mxu0 0.0
        %1012 = vmatmul.mubr.f32.gmra.mrb[0].mxu0 %v885
        %v1013 = vpop.f32.mrb[0].mxu0
        %v1014 = vadd.f32 0.0, %v1013
        %v1015 = vpop.f32.mrb[0].mxu0
        %1016 = vmatprep.mubr.f32.mxu0 0.0
        %1017 = vmatmul.mubr.f32.gmra.mrb[0].mxu0 %v888
        %v1018 = vpop.f32.mrb[0].mxu0
        %v1019 = vadd.f32 0.0, %v1018
        %v1020 = vpop.f32.mrb[0].mxu0
        %1021 = vmatprep.mubr.f32.mxu0 0.0
        %1022 = vmatmul.mubr.f32.gmra.mrb[0].mxu0 %v891
        %v1023 = vpop.f32.mrb[0].mxu0
        %v1024 = vadd.f32 0.0, %v1023
        %v1025 = vpop.f32.mrb[0].mxu0
        %1026 = vmatprep.mubr.f32.mxu0 0.0
        %1027 = vmatmul.mubr.f32.gmra.mrb[0].mxu0 %v894
        %v1028 = vpop.f32.mrb[0].mxu0
        %v1029 = vadd.f32 0.0, %v1028
        %v1030 = vpop.f32.mrb[0].mxu0
        %1031 = vmatprep.mubr.f32.mxu0 0.0
        %1032 = vmatmul.mubr.f32.gmra.mrb[0].mxu0 %v897
        %v1033 = vpop.f32.mrb[0].mxu0
        %v1034 = vadd.f32 0.0, %v1033
        %v1035 = vpop.f32.mrb[0].mxu0
        %1036 = vmatprep.mubr.f32.mxu0 0.0
        %1037 = vmatmul.mubr.f32.gmra.mrb[0].mxu0 %v900
        %v1038 = vpop.f32.mrb[0].mxu0
        %v1039 = vadd.f32 0.0, %v1038
        %v1040 = vpop.f32.mrb[0].mxu0
        %1041 = vmatprep.mubr.f32.mxu0 0.0
        %1042 = vmatmul.mubr.f32.gmra.mrb[0].mxu0 %v903
        %v1043 = vpop.f32.mrb[0].mxu0
        %v1044 = vadd.f32 0.0, %v1043
        %v1045 = vpop.f32.mrb[0].mxu0
        %1046 = vmatprep.mubr.f32.mxu0 0.0
        %1047 = vmatmul.mubr.f32.gmra.mrb[0].mxu0 %v906
        %v1048 = vpop.f32.mrb[0].mxu0
        %v1049 = vadd.f32 0.0, %v1048
        %v1050 = vpop.f32.mrb[0].mxu0
        %1051 = vmatprep.mubr.f32.mxu0 0.0
        %1052 = vmatmul.mubr.f32.gmra.mrb[0].mxu0 %v909
        %v1053 = vpop.f32.mrb[0].mxu0
        %v1054 = vadd.f32 0.0, %v1053
        %v1055 = vpop.f32.mrb[0].mxu0
        %1056 = vmatprep.mubr.f32.mxu0 0.0
        %1057 = vmatmul.mubr.f32.gmra.mrb[0].mxu0 %v912
        %v1058 = vpop.f32.mrb[0].mxu0
        %v1059 = vadd.f32 0.0, %v1058
        %v1060 = vpop.f32.mrb[0].mxu0
        %1061 = vdwg.mxu0
        %v1062 = vadd.f32 %v770, %v984
        %v1063 = vadd.f32 %v775, %v989
        %v1064 = vadd.f32 %v780, %v994
        %v1065 = vadd.f32 %v785, %v999
        %v1066 = vadd.f32 %v790, %v1004
        %v1067 = vadd.f32 %v795, %v1009
        %v1068 = vadd.f32 %v800, %v1014
        %v1069 = vadd.f32 %v805, %v1019
        %v1070 = vadd.f32 %v810, %v1024
        %v1071 = vadd.f32 %v815, %v1029
        %v1072 = vadd.f32 %v820, %v1034
        %v1073 = vadd.f32 %v825, %v1039
        %v1074 = vadd.f32 %v830, %v1044
        %v1075 = vadd.f32 %v835, %v1049
        %v1076 = vadd.f32 %v840, %v1054
        %v1077 = vadd.f32 %v845, %v1059
        %s1078 = scalar_lea.vmem [#allocation2], 24
        %v1079 = vld [vmem:[%s1078] sm:$0xff]
        %v1080 = vld [vmem:[%s1078 + $0x8] sm:$0xff]
        %v1081 = vld [vmem:[%s1078 + $0x18] sm:$0xff]
        %v1082 = vld [vmem:[%s1078 + $0x20] sm:$0xff]
        %v1083 = vld [vmem:[%s1078 + $0x30] sm:$0xff]
        %v1084 = vld [vmem:[%s1078 + $0x38] sm:$0xff]
        %v1085 = vld [vmem:[%s1078 + $0x48] sm:$0xff]
        %v1086 = vld [vmem:[%s1078 + $0x50] sm:$0xff]
        %v1087 = vld [vmem:[%s1078 + $0x60] sm:$0xff]
        %v1088 = vld [vmem:[%s1078 + $0x68] sm:$0xff]
        %v1089 = vld [vmem:[%s1078 + $0x78] sm:$0xff]
        %v1090 = vld [vmem:[%s1078 + $0x80] sm:$0xff]
        %v1091 = vld [vmem:[%s1078 + $0x90] sm:$0xff]
        %v1092 = vld [vmem:[%s1078 + $0x98] sm:$0xff]
        %v1093 = vld [vmem:[%s1078 + $0xa8] sm:$0xff]
        %v1094 = vld [vmem:[%s1078 + $0xb0] sm:$0xff]
        %s1095 = scalar_lea.vmem %s2, 12
        %v1096 = vld [vmem:[%s1095] sm:$0xf]
        %v1098 = vsel %vm346, %v1079, 0
        %v1101 = vsel %vm346, %v1080, 0
        %v1104 = vsel %vm346, %v1081, 0
        %v1107 = vsel %vm346, %v1082, 0
        %v1110 = vsel %vm346, %v1083, 0
        %v1113 = vsel %vm346, %v1084, 0
        %v1116 = vsel %vm346, %v1085, 0
        %v1119 = vsel %vm346, %v1086, 0
        %v1122 = vsel %vm346, %v1087, 0
        %v1125 = vsel %vm346, %v1088, 0
        %v1128 = vsel %vm346, %v1089, 0
        %v1131 = vsel %vm346, %v1090, 0
        %v1134 = vsel %vm346, %v1091, 0
        %v1137 = vsel %vm346, %v1092, 0
        %v1140 = vsel %vm346, %v1093, 0
        %v1143 = vsel %vm346, %v1094, 0
        %v1146 = vsel %vm503, %v1096, 0
        %1148 = vmatprep.subr.mxu0 0.0
        %1149 = vmatpush1.msra.mxu0 %v1146
        %1150 = vmatprep.subr.mxu0 0.0
        %1151 = vmatpush1.msra.mxu0 0.0
        %1152 = vmatprep.subr.mxu0 0.0
        %1153 = vmatpush1.msra.mxu0 0.0
        %1154 = vmatprep.subr.mxu0 0.0
        %1155 = vmatpush1.msra.mxu0 0.0
        %1156 = vmatprep.subr.mxu0 0.0
        %1157 = vmatpush1.msra.mxu0 0.0
        %1158 = vmatprep.subr.mxu0 0.0
        %1159 = vmatpush1.msra.mxu0 0.0
        %1160 = vmatprep.subr.mxu0 0.0
        %1161 = vmatpush1.msra.mxu0 0.0
        %1162 = vmatprep.subr.mxu0 0.0
        %1163 = vmatpush1.msra.mxu0 0.0
        %1164 = vmatprep.subr.mxu0 0.0
        %1165 = vmatpush1.msra.mxu0 0.0
        %1166 = vmatprep.subr.mxu0 0.0
        %1167 = vmatpush1.msra.mxu0 0.0
        %1168 = vmatprep.subr.mxu0 0.0
        %1169 = vmatpush1.msra.mxu0 0.0
        %1170 = vmatprep.subr.mxu0 0.0
        %1171 = vmatpush1.msra.mxu0 0.0
        %1172 = vmatprep.subr.mxu0 0.0
        %1173 = vmatpush1.msra.mxu0 0.0
        %1174 = vmatprep.subr.mxu0 0.0
        %1175 = vmatpush1.msra.mxu0 0.0
        %1176 = vmatprep.subr.mxu0 0.0
        %1177 = vmatpush1.msra.mxu0 0.0
        %1178 = vmatprep.subr.mxu0 0.0
        %1179 = vmatpush1.msra.mxu0 0.0
        %1180 = vmatprep.subr.mxu0 0.0
        %1181 = vmatpush1.msra.mxu0 0.0
        %1182 = vmatprep.subr.mxu0 0.0
        %1183 = vmatpush1.msra.mxu0 0.0
        %1184 = vmatprep.subr.mxu0 0.0
        %1185 = vmatpush1.msra.mxu0 0.0
        %1186 = vmatprep.subr.mxu0 0.0
        %1187 = vmatpush1.msra.mxu0 0.0
        %1188 = vmatprep.subr.mxu0 0.0
        %1189 = vmatpush1.msra.mxu0 0.0
        %1190 = vmatprep.subr.mxu0 0.0
        %1191 = vmatpush1.msra.mxu0 0.0
        %1192 = vmatprep.subr.mxu0 0.0
        %1193 = vmatpush1.msra.mxu0 0.0
        %1194 = vmatprep.subr.mxu0 0.0
        %1195 = vmatpush1.msra.mxu0 0.0
        %1196 = vmatprep.subr.mxu0 0.0
        %1197 = vmatpush1.msra.mxu0 0.0
        %1198 = vmatprep.subr.mxu0 0.0
        %1199 = vmatpush1.msra.mxu0 0.0
        %1200 = vmatprep.subr.mxu0 0.0
        %1201 = vmatpush1.msra.mxu0 0.0
        %1202 = vmatprep.subr.mxu0 0.0
        %1203 = vmatpush1.msra.mxu0 0.0
        %1204 = vmatprep.subr.mxu0 0.0
        %1205 = vmatpush1.msra.mxu0 0.0
        %1206 = vmatprep.subr.mxu0 0.0
        %1207 = vmatpush1.msra.mxu0 0.0
        %1208 = vmatprep.subr.mxu0 0.0
        %1209 = vmatpush1.msra.mxu0 0.0
        %1210 = vmatprep.subr.mxu0 0.0
        %1211 = vmatpush1.msra.mxu0 0.0
        %1212 = vmatprep.mubr.f32.mxu0 0.0
        %1213 = vmatmul.mubr.f32.gmra.mrb[0].mxu0 %v1098
        %v1214 = vpop.f32.mrb[0].mxu0
        %v1215 = vadd.f32 0.0, %v1214
        %v1216 = vpop.f32.mrb[0].mxu0
        %1217 = vmatprep.mubr.f32.mxu0 0.0
        %1218 = vmatmul.mubr.f32.gmra.mrb[0].mxu0 %v1101
        %v1219 = vpop.f32.mrb[0].mxu0
        %v1220 = vadd.f32 0.0, %v1219
        %v1221 = vpop.f32.mrb[0].mxu0
        %1222 = vmatprep.mubr.f32.mxu0 0.0
        %1223 = vmatmul.mubr.f32.gmra.mrb[0].mxu0 %v1104
        %v1224 = vpop.f32.mrb[0].mxu0
        %v1225 = vadd.f32 0.0, %v1224
        %v1226 = vpop.f32.mrb[0].mxu0
        %1227 = vmatprep.mubr.f32.mxu0 0.0
        %1228 = vmatmul.mubr.f32.gmra.mrb[0].mxu0 %v1107
        %v1229 = vpop.f32.mrb[0].mxu0
        %v1230 = vadd.f32 0.0, %v1229
        %v1231 = vpop.f32.mrb[0].mxu0
        %1232 = vmatprep.mubr.f32.mxu0 0.0
        %1233 = vmatmul.mubr.f32.gmra.mrb[0].mxu0 %v1110
        %v1234 = vpop.f32.mrb[0].mxu0
        %v1235 = vadd.f32 0.0, %v1234
        %v1236 = vpop.f32.mrb[0].mxu0
        %1237 = vmatprep.mubr.f32.mxu0 0.0
        %1238 = vmatmul.mubr.f32.gmra.mrb[0].mxu0 %v1113
        %v1239 = vpop.f32.mrb[0].mxu0
        %v1240 = vadd.f32 0.0, %v1239
        %v1241 = vpop.f32.mrb[0].mxu0
        %1242 = vmatprep.mubr.f32.mxu0 0.0
        %1243 = vmatmul.mubr.f32.gmra.mrb[0].mxu0 %v1116
        %v1244 = vpop.f32.mrb[0].mxu0
        %v1245 = vadd.f32 0.0, %v1244
        %v1246 = vpop.f32.mrb[0].mxu0
        %1247 = vmatprep.mubr.f32.mxu0 0.0
        %1248 = vmatmul.mubr.f32.gmra.mrb[0].mxu0 %v1119
        %v1249 = vpop.f32.mrb[0].mxu0
        %v1250 = vadd.f32 0.0, %v1249
        %v1251 = vpop.f32.mrb[0].mxu0
        %1252 = vmatprep.mubr.f32.mxu0 0.0
        %1253 = vmatmul.mubr.f32.gmra.mrb[0].mxu0 %v1122
        %v1254 = vpop.f32.mrb[0].mxu0
        %v1255 = vadd.f32 0.0, %v1254
        %v1256 = vpop.f32.mrb[0].mxu0
        %1257 = vmatprep.mubr.f32.mxu0 0.0
        %1258 = vmatmul.mubr.f32.gmra.mrb[0].mxu0 %v1125
        %v1259 = vpop.f32.mrb[0].mxu0
        %v1260 = vadd.f32 0.0, %v1259
        %v1261 = vpop.f32.mrb[0].mxu0
        %1262 = vmatprep.mubr.f32.mxu0 0.0
        %1263 = vmatmul.mubr.f32.gmra.mrb[0].mxu0 %v1128
        %v1264 = vpop.f32.mrb[0].mxu0
        %v1265 = vadd.f32 0.0, %v1264
        %v1266 = vpop.f32.mrb[0].mxu0
        %1267 = vmatprep.mubr.f32.mxu0 0.0
        %1268 = vmatmul.mubr.f32.gmra.mrb[0].mxu0 %v1131
        %v1269 = vpop.f32.mrb[0].mxu0
        %v1270 = vadd.f32 0.0, %v1269
        %v1271 = vpop.f32.mrb[0].mxu0
        %1272 = vmatprep.mubr.f32.mxu0 0.0
        %1273 = vmatmul.mubr.f32.gmra.mrb[0].mxu0 %v1134
        %v1274 = vpop.f32.mrb[0].mxu0
        %v1275 = vadd.f32 0.0, %v1274
        %v1276 = vpop.f32.mrb[0].mxu0
        %1277 = vmatprep.mubr.f32.mxu0 0.0
        %1278 = vmatmul.mubr.f32.gmra.mrb[0].mxu0 %v1137
        %v1279 = vpop.f32.mrb[0].mxu0
        %v1280 = vadd.f32 0.0, %v1279
        %v1281 = vpop.f32.mrb[0].mxu0
        %1282 = vmatprep.mubr.f32.mxu0 0.0
        %1283 = vmatmul.mubr.f32.gmra.mrb[0].mxu0 %v1140
        %v1284 = vpop.f32.mrb[0].mxu0
        %v1285 = vadd.f32 0.0, %v1284
        %v1286 = vpop.f32.mrb[0].mxu0
        %1287 = vmatprep.mubr.f32.mxu0 0.0
        %1288 = vmatmul.mubr.f32.gmra.mrb[0].mxu0 %v1143
        %v1289 = vpop.f32.mrb[0].mxu0
        %v1290 = vadd.f32 0.0, %v1289
        %v1291 = vpop.f32.mrb[0].mxu0
        %1292 = vdwg.mxu0
        %v1293 = vadd.f32 %v1062, %v1215
        %v1294 = vadd.f32 %v1063, %v1220
        %v1295 = vadd.f32 %v1064, %v1225
        %v1296 = vadd.f32 %v1065, %v1230
        %v1297 = vadd.f32 %v1066, %v1235
        %v1298 = vadd.f32 %v1067, %v1240
        %v1299 = vadd.f32 %v1068, %v1245
        %v1300 = vadd.f32 %v1069, %v1250
        %v1301 = vadd.f32 %v1070, %v1255
        %v1302 = vadd.f32 %v1071, %v1260
        %v1303 = vadd.f32 %v1072, %v1265
        %v1304 = vadd.f32 %v1073, %v1270
        %v1305 = vadd.f32 %v1074, %v1275
        %v1306 = vadd.f32 %v1075, %v1280
        %v1307 = vadd.f32 %v1076, %v1285
        %v1308 = vadd.f32 %v1077, %v1290
        %v1309 = vld [vmem:[%s1078 + $0x1] sm:$0xff]
        %v1310 = vld [vmem:[%s1078 + $0x9] sm:$0xff]
        %v1311 = vld [vmem:[%s1078 + $0x19] sm:$0xff]
        %v1312 = vld [vmem:[%s1078 + $0x21] sm:$0xff]
        %v1313 = vld [vmem:[%s1078 + $0x31] sm:$0xff]
        %v1314 = vld [vmem:[%s1078 + $0x39] sm:$0xff]
        %v1315 = vld [vmem:[%s1078 + $0x49] sm:$0xff]
        %v1316 = vld [vmem:[%s1078 + $0x51] sm:$0xff]
        %v1317 = vld [vmem:[%s1078 + $0x61] sm:$0xff]
        %v1318 = vld [vmem:[%s1078 + $0x69] sm:$0xff]
        %v1319 = vld [vmem:[%s1078 + $0x79] sm:$0xff]
        %v1320 = vld [vmem:[%s1078 + $0x81] sm:$0xff]
        %v1321 = vld [vmem:[%s1078 + $0x91] sm:$0xff]
        %v1322 = vld [vmem:[%s1078 + $0x99] sm:$0xff]
        %v1323 = vld [vmem:[%s1078 + $0xa9] sm:$0xff]
        %v1324 = vld [vmem:[%s1078 + $0xb1] sm:$0xff]
        %s1325 = scalar_lea.vmem %s2, 16
        %v1326 = vld [vmem:[%s1325] sm:$0xf]
        %v1328 = vsel %vm346, %v1309, 0
        %v1331 = vsel %vm346, %v1310, 0
        %v1334 = vsel %vm346, %v1311, 0
        %v1337 = vsel %vm346, %v1312, 0
        %v1340 = vsel %vm346, %v1313, 0
        %v1343 = vsel %vm346, %v1314, 0
        %v1346 = vsel %vm346, %v1315, 0
        %v1349 = vsel %vm346, %v1316, 0
        %v1352 = vsel %vm346, %v1317, 0
        %v1355 = vsel %vm346, %v1318, 0
        %v1358 = vsel %vm346, %v1319, 0
        %v1361 = vsel %vm346, %v1320, 0
        %v1364 = vsel %vm346, %v1321, 0
        %v1367 = vsel %vm346, %v1322, 0
        %v1370 = vsel %vm346, %v1323, 0
        %v1373 = vsel %vm346, %v1324, 0
        %v1376 = vsel %vm503, %v1326, 0
        %1378 = vmatprep.subr.mxu0 0.0
        %1379 = vmatpush1.msra.mxu0 %v1376
        %1380 = vmatprep.subr.mxu0 0.0
        %1381 = vmatpush1.msra.mxu0 0.0
        %1382 = vmatprep.subr.mxu0 0.0
        %1383 = vmatpush1.msra.mxu0 0.0
        %1384 = vmatprep.subr.mxu0 0.0
        %1385 = vmatpush1.msra.mxu0 0.0
        %1386 = vmatprep.subr.mxu0 0.0
        %1387 = vmatpush1.msra.mxu0 0.0
        %1388 = vmatprep.subr.mxu0 0.0
        %1389 = vmatpush1.msra.mxu0 0.0
        %1390 = vmatprep.subr.mxu0 0.0
        %1391 = vmatpush1.msra.mxu0 0.0
        %1392 = vmatprep.subr.mxu0 0.0
        %1393 = vmatpush1.msra.mxu0 0.0
        %1394 = vmatprep.subr.mxu0 0.0
        %1395 = vmatpush1.msra.mxu0 0.0
        %1396 = vmatprep.subr.mxu0 0.0
        %1397 = vmatpush1.msra.mxu0 0.0
        %1398 = vmatprep.subr.mxu0 0.0
        %1399 = vmatpush1.msra.mxu0 0.0
        %1400 = vmatprep.subr.mxu0 0.0
        %1401 = vmatpush1.msra.mxu0 0.0
        %1402 = vmatprep.subr.mxu0 0.0
        %1403 = vmatpush1.msra.mxu0 0.0
        %1404 = vmatprep.subr.mxu0 0.0
        %1405 = vmatpush1.msra.mxu0 0.0
        %1406 = vmatprep.subr.mxu0 0.0
        %1407 = vmatpush1.msra.mxu0 0.0
        %1408 = vmatprep.subr.mxu0 0.0
        %1409 = vmatpush1.msra.mxu0 0.0
        %1410 = vmatprep.subr.mxu0 0.0
        %1411 = vmatpush1.msra.mxu0 0.0
        %1412 = vmatprep.subr.mxu0 0.0
        %1413 = vmatpush1.msra.mxu0 0.0
        %1414 = vmatprep.subr.mxu0 0.0
        %1415 = vmatpush1.msra.mxu0 0.0
        %1416 = vmatprep.subr.mxu0 0.0
        %1417 = vmatpush1.msra.mxu0 0.0
        %1418 = vmatprep.subr.mxu0 0.0
        %1419 = vmatpush1.msra.mxu0 0.0
        %1420 = vmatprep.subr.mxu0 0.0
        %1421 = vmatpush1.msra.mxu0 0.0
        %1422 = vmatprep.subr.mxu0 0.0
        %1423 = vmatpush1.msra.mxu0 0.0
        %1424 = vmatprep.subr.mxu0 0.0
        %1425 = vmatpush1.msra.mxu0 0.0
        %1426 = vmatprep.subr.mxu0 0.0
        %1427 = vmatpush1.msra.mxu0 0.0
        %1428 = vmatprep.subr.mxu0 0.0
        %1429 = vmatpush1.msra.mxu0 0.0
        %1430 = vmatprep.subr.mxu0 0.0
        %1431 = vmatpush1.msra.mxu0 0.0
        %1432 = vmatprep.subr.mxu0 0.0
        %1433 = vmatpush1.msra.mxu0 0.0
        %1434 = vmatprep.subr.mxu0 0.0
        %1435 = vmatpush1.msra.mxu0 0.0
        %1436 = vmatprep.subr.mxu0 0.0
        %1437 = vmatpush1.msra.mxu0 0.0
        %1438 = vmatprep.subr.mxu0 0.0
        %1439 = vmatpush1.msra.mxu0 0.0
        %1440 = vmatprep.subr.mxu0 0.0
        %1441 = vmatpush1.msra.mxu0 0.0
        %1442 = vmatprep.mubr.f32.mxu0 0.0
        %1443 = vmatmul.mubr.f32.gmra.mrb[0].mxu0 %v1328
        %v1444 = vpop.f32.mrb[0].mxu0
        %v1445 = vadd.f32 0.0, %v1444
        %v1446 = vpop.f32.mrb[0].mxu0
        %1447 = vmatprep.mubr.f32.mxu0 0.0
        %1448 = vmatmul.mubr.f32.gmra.mrb[0].mxu0 %v1331
        %v1449 = vpop.f32.mrb[0].mxu0
        %v1450 = vadd.f32 0.0, %v1449
        %v1451 = vpop.f32.mrb[0].mxu0
        %1452 = vmatprep.mubr.f32.mxu0 0.0
        %1453 = vmatmul.mubr.f32.gmra.mrb[0].mxu0 %v1334
        %v1454 = vpop.f32.mrb[0].mxu0
        %v1455 = vadd.f32 0.0, %v1454
        %v1456 = vpop.f32.mrb[0].mxu0
        %1457 = vmatprep.mubr.f32.mxu0 0.0
        %1458 = vmatmul.mubr.f32.gmra.mrb[0].mxu0 %v1337
        %v1459 = vpop.f32.mrb[0].mxu0
        %v1460 = vadd.f32 0.0, %v1459
        %v1461 = vpop.f32.mrb[0].mxu0
        %1462 = vmatprep.mubr.f32.mxu0 0.0
        %1463 = vmatmul.mubr.f32.gmra.mrb[0].mxu0 %v1340
        %v1464 = vpop.f32.mrb[0].mxu0
        %v1465 = vadd.f32 0.0, %v1464
        %v1466 = vpop.f32.mrb[0].mxu0
        %1467 = vmatprep.mubr.f32.mxu0 0.0
        %1468 = vmatmul.mubr.f32.gmra.mrb[0].mxu0 %v1343
        %v1469 = vpop.f32.mrb[0].mxu0
        %v1470 = vadd.f32 0.0, %v1469
        %v1471 = vpop.f32.mrb[0].mxu0
        %1472 = vmatprep.mubr.f32.mxu0 0.0
        %1473 = vmatmul.mubr.f32.gmra.mrb[0].mxu0 %v1346
        %v1474 = vpop.f32.mrb[0].mxu0
        %v1475 = vadd.f32 0.0, %v1474
        %v1476 = vpop.f32.mrb[0].mxu0
        %1477 = vmatprep.mubr.f32.mxu0 0.0
        %1478 = vmatmul.mubr.f32.gmra.mrb[0].mxu0 %v1349
        %v1479 = vpop.f32.mrb[0].mxu0
        %v1480 = vadd.f32 0.0, %v1479
        %v1481 = vpop.f32.mrb[0].mxu0
        %1482 = vmatprep.mubr.f32.mxu0 0.0
        %1483 = vmatmul.mubr.f32.gmra.mrb[0].mxu0 %v1352
        %v1484 = vpop.f32.mrb[0].mxu0
        %v1485 = vadd.f32 0.0, %v1484
        %v1486 = vpop.f32.mrb[0].mxu0
        %1487 = vmatprep.mubr.f32.mxu0 0.0
        %1488 = vmatmul.mubr.f32.gmra.mrb[0].mxu0 %v1355
        %v1489 = vpop.f32.mrb[0].mxu0
        %v1490 = vadd.f32 0.0, %v1489
        %v1491 = vpop.f32.mrb[0].mxu0
        %1492 = vmatprep.mubr.f32.mxu0 0.0
        %1493 = vmatmul.mubr.f32.gmra.mrb[0].mxu0 %v1358
        %v1494 = vpop.f32.mrb[0].mxu0
        %v1495 = vadd.f32 0.0, %v1494
        %v1496 = vpop.f32.mrb[0].mxu0
        %1497 = vmatprep.mubr.f32.mxu0 0.0
        %1498 = vmatmul.mubr.f32.gmra.mrb[0].mxu0 %v1361
        %v1499 = vpop.f32.mrb[0].mxu0
        %v1500 = vadd.f32 0.0, %v1499
        %v1501 = vpop.f32.mrb[0].mxu0
        %1502 = vmatprep.mubr.f32.mxu0 0.0
        %1503 = vmatmul.mubr.f32.gmra.mrb[0].mxu0 %v1364
        %v1504 = vpop.f32.mrb[0].mxu0
        %v1505 = vadd.f32 0.0, %v1504
        %v1506 = vpop.f32.mrb[0].mxu0
        %1507 = vmatprep.mubr.f32.mxu0 0.0
        %1508 = vmatmul.mubr.f32.gmra.mrb[0].mxu0 %v1367
        %v1509 = vpop.f32.mrb[0].mxu0
        %v1510 = vadd.f32 0.0, %v1509
        %v1511 = vpop.f32.mrb[0].mxu0
        %1512 = vmatprep.mubr.f32.mxu0 0.0
        %1513 = vmatmul.mubr.f32.gmra.mrb[0].mxu0 %v1370
        %v1514 = vpop.f32.mrb[0].mxu0
        %v1515 = vadd.f32 0.0, %v1514
        %v1516 = vpop.f32.mrb[0].mxu0
        %1517 = vmatprep.mubr.f32.mxu0 0.0
        %1518 = vmatmul.mubr.f32.gmra.mrb[0].mxu0 %v1373
        %v1519 = vpop.f32.mrb[0].mxu0
        %v1520 = vadd.f32 0.0, %v1519
        %v1521 = vpop.f32.mrb[0].mxu0
        %1522 = vdwg.mxu0
        %v1523 = vadd.f32 %v1293, %v1445
        %v1524 = vadd.f32 %v1294, %v1450
        %v1525 = vadd.f32 %v1295, %v1455
        %v1526 = vadd.f32 %v1296, %v1460
        %v1527 = vadd.f32 %v1297, %v1465
        %v1528 = vadd.f32 %v1298, %v1470
        %v1529 = vadd.f32 %v1299, %v1475
        %v1530 = vadd.f32 %v1300, %v1480
        %v1531 = vadd.f32 %v1301, %v1485
        %v1532 = vadd.f32 %v1302, %v1490
        %v1533 = vadd.f32 %v1303, %v1495
        %v1534 = vadd.f32 %v1304, %v1500
        %v1535 = vadd.f32 %v1305, %v1505
        %v1536 = vadd.f32 %v1306, %v1510
        %v1537 = vadd.f32 %v1307, %v1515
        %v1538 = vadd.f32 %v1308, %v1520
        %v1539 = vld [vmem:[%s1078 + $0x2] sm:$0xff]
        %v1540 = vld [vmem:[%s1078 + $0xa] sm:$0xff]
        %v1541 = vld [vmem:[%s1078 + $0x1a] sm:$0xff]
        %v1542 = vld [vmem:[%s1078 + $0x22] sm:$0xff]
        %v1543 = vld [vmem:[%s1078 + $0x32] sm:$0xff]
        %v1544 = vld [vmem:[%s1078 + $0x3a] sm:$0xff]
        %v1545 = vld [vmem:[%s1078 + $0x4a] sm:$0xff]
        %v1546 = vld [vmem:[%s1078 + $0x52] sm:$0xff]
        %v1547 = vld [vmem:[%s1078 + $0x62] sm:$0xff]
        %v1548 = vld [vmem:[%s1078 + $0x6a] sm:$0xff]
        %v1549 = vld [vmem:[%s1078 + $0x7a] sm:$0xff]
        %v1550 = vld [vmem:[%s1078 + $0x82] sm:$0xff]
        %v1551 = vld [vmem:[%s1078 + $0x92] sm:$0xff]
        %v1552 = vld [vmem:[%s1078 + $0x9a] sm:$0xff]
        %v1553 = vld [vmem:[%s1078 + $0xaa] sm:$0xff]
        %v1554 = vld [vmem:[%s1078 + $0xb2] sm:$0xff]
        %s1555 = scalar_lea.vmem %s2, 20
        %v1556 = vld [vmem:[%s1555] sm:$0xf]
        %v1558 = vsel %vm346, %v1539, 0
        %v1561 = vsel %vm346, %v1540, 0
        %v1564 = vsel %vm346, %v1541, 0
        %v1567 = vsel %vm346, %v1542, 0
        %v1570 = vsel %vm346, %v1543, 0
        %v1573 = vsel %vm346, %v1544, 0
        %v1576 = vsel %vm346, %v1545, 0
        %v1579 = vsel %vm346, %v1546, 0
        %v1582 = vsel %vm346, %v1547, 0
        %v1585 = vsel %vm346, %v1548, 0
        %v1588 = vsel %vm346, %v1549, 0
        %v1591 = vsel %vm346, %v1550, 0
        %v1594 = vsel %vm346, %v1551, 0
        %v1597 = vsel %vm346, %v1552, 0
        %v1600 = vsel %vm346, %v1553, 0
        %v1603 = vsel %vm346, %v1554, 0
        %v1606 = vsel %vm503, %v1556, 0
        %1608 = vmatprep.subr.mxu0 0.0
        %1609 = vmatpush1.msra.mxu0 %v1606
        %1610 = vmatprep.subr.mxu0 0.0
        %1611 = vmatpush1.msra.mxu0 0.0
        %1612 = vmatprep.subr.mxu0 0.0
        %1613 = vmatpush1.msra.mxu0 0.0
        %1614 = vmatprep.subr.mxu0 0.0
        %1615 = vmatpush1.msra.mxu0 0.0
        %1616 = vmatprep.subr.mxu0 0.0
        %1617 = vmatpush1.msra.mxu0 0.0
        %1618 = vmatprep.subr.mxu0 0.0
        %1619 = vmatpush1.msra.mxu0 0.0
        %1620 = vmatprep.subr.mxu0 0.0
        %1621 = vmatpush1.msra.mxu0 0.0
        %1622 = vmatprep.subr.mxu0 0.0
        %1623 = vmatpush1.msra.mxu0 0.0
        %1624 = vmatprep.subr.mxu0 0.0
        %1625 = vmatpush1.msra.mxu0 0.0
        %1626 = vmatprep.subr.mxu0 0.0
        %1627 = vmatpush1.msra.mxu0 0.0
        %1628 = vmatprep.subr.mxu0 0.0
        %1629 = vmatpush1.msra.mxu0 0.0
        %1630 = vmatprep.subr.mxu0 0.0
        %1631 = vmatpush1.msra.mxu0 0.0
        %1632 = vmatprep.subr.mxu0 0.0
        %1633 = vmatpush1.msra.mxu0 0.0
        %1634 = vmatprep.subr.mxu0 0.0
        %1635 = vmatpush1.msra.mxu0 0.0
        %1636 = vmatprep.subr.mxu0 0.0
        %1637 = vmatpush1.msra.mxu0 0.0
        %1638 = vmatprep.subr.mxu0 0.0
        %1639 = vmatpush1.msra.mxu0 0.0
        %1640 = vmatprep.subr.mxu0 0.0
        %1641 = vmatpush1.msra.mxu0 0.0
        %1642 = vmatprep.subr.mxu0 0.0
        %1643 = vmatpush1.msra.mxu0 0.0
        %1644 = vmatprep.subr.mxu0 0.0
        %1645 = vmatpush1.msra.mxu0 0.0
        %1646 = vmatprep.subr.mxu0 0.0
        %1647 = vmatpush1.msra.mxu0 0.0
        %1648 = vmatprep.subr.mxu0 0.0
        %1649 = vmatpush1.msra.mxu0 0.0
        %1650 = vmatprep.subr.mxu0 0.0
        %1651 = vmatpush1.msra.mxu0 0.0
        %1652 = vmatprep.subr.mxu0 0.0
        %1653 = vmatpush1.msra.mxu0 0.0
        %1654 = vmatprep.subr.mxu0 0.0
        %1655 = vmatpush1.msra.mxu0 0.0
        %1656 = vmatprep.subr.mxu0 0.0
        %1657 = vmatpush1.msra.mxu0 0.0
        %1658 = vmatprep.subr.mxu0 0.0
        %1659 = vmatpush1.msra.mxu0 0.0
        %1660 = vmatprep.subr.mxu0 0.0
        %1661 = vmatpush1.msra.mxu0 0.0
        %1662 = vmatprep.subr.mxu0 0.0
        %1663 = vmatpush1.msra.mxu0 0.0
        %1664 = vmatprep.subr.mxu0 0.0
        %1665 = vmatpush1.msra.mxu0 0.0
        %1666 = vmatprep.subr.mxu0 0.0
        %1667 = vmatpush1.msra.mxu0 0.0
        %1668 = vmatprep.subr.mxu0 0.0
        %1669 = vmatpush1.msra.mxu0 0.0
        %1670 = vmatprep.subr.mxu0 0.0
        %1671 = vmatpush1.msra.mxu0 0.0
        %1672 = vmatprep.mubr.f32.mxu0 0.0
        %1673 = vmatmul.mubr.f32.gmra.mrb[0].mxu0 %v1558
        %v1674 = vpop.f32.mrb[0].mxu0
        %v1675 = vadd.f32 0.0, %v1674
        %v1676 = vpop.f32.mrb[0].mxu0
        %1677 = vmatprep.mubr.f32.mxu0 0.0
        %1678 = vmatmul.mubr.f32.gmra.mrb[0].mxu0 %v1561
        %v1679 = vpop.f32.mrb[0].mxu0
        %v1680 = vadd.f32 0.0, %v1679
        %v1681 = vpop.f32.mrb[0].mxu0
        %1682 = vmatprep.mubr.f32.mxu0 0.0
        %1683 = vmatmul.mubr.f32.gmra.mrb[0].mxu0 %v1564
        %v1684 = vpop.f32.mrb[0].mxu0
        %v1685 = vadd.f32 0.0, %v1684
        %v1686 = vpop.f32.mrb[0].mxu0
        %1687 = vmatprep.mubr.f32.mxu0 0.0
        %1688 = vmatmul.mubr.f32.gmra.mrb[0].mxu0 %v1567
        %v1689 = vpop.f32.mrb[0].mxu0
        %v1690 = vadd.f32 0.0, %v1689
        %v1691 = vpop.f32.mrb[0].mxu0
        %1692 = vmatprep.mubr.f32.mxu0 0.0
        %1693 = vmatmul.mubr.f32.gmra.mrb[0].mxu0 %v1570
        %v1694 = vpop.f32.mrb[0].mxu0
        %v1695 = vadd.f32 0.0, %v1694
        %v1696 = vpop.f32.mrb[0].mxu0
        %1697 = vmatprep.mubr.f32.mxu0 0.0
        %1698 = vmatmul.mubr.f32.gmra.mrb[0].mxu0 %v1573
        %v1699 = vpop.f32.mrb[0].mxu0
        %v1700 = vadd.f32 0.0, %v1699
        %v1701 = vpop.f32.mrb[0].mxu0
        %1702 = vmatprep.mubr.f32.mxu0 0.0
        %1703 = vmatmul.mubr.f32.gmra.mrb[0].mxu0 %v1576
        %v1704 = vpop.f32.mrb[0].mxu0
        %v1705 = vadd.f32 0.0, %v1704
        %v1706 = vpop.f32.mrb[0].mxu0
        %1707 = vmatprep.mubr.f32.mxu0 0.0
        %1708 = vmatmul.mubr.f32.gmra.mrb[0].mxu0 %v1579
        %v1709 = vpop.f32.mrb[0].mxu0
        %v1710 = vadd.f32 0.0, %v1709
        %v1711 = vpop.f32.mrb[0].mxu0
        %1712 = vmatprep.mubr.f32.mxu0 0.0
        %1713 = vmatmul.mubr.f32.gmra.mrb[0].mxu0 %v1582
        %v1714 = vpop.f32.mrb[0].mxu0
        %v1715 = vadd.f32 0.0, %v1714
        %v1716 = vpop.f32.mrb[0].mxu0
        %1717 = vmatprep.mubr.f32.mxu0 0.0
        %1718 = vmatmul.mubr.f32.gmra.mrb[0].mxu0 %v1585
        %v1719 = vpop.f32.mrb[0].mxu0
        %v1720 = vadd.f32 0.0, %v1719
        %v1721 = vpop.f32.mrb[0].mxu0
        %1722 = vmatprep.mubr.f32.mxu0 0.0
        %1723 = vmatmul.mubr.f32.gmra.mrb[0].mxu0 %v1588
        %v1724 = vpop.f32.mrb[0].mxu0
        %v1725 = vadd.f32 0.0, %v1724
        %v1726 = vpop.f32.mrb[0].mxu0
        %1727 = vmatprep.mubr.f32.mxu0 0.0
        %1728 = vmatmul.mubr.f32.gmra.mrb[0].mxu0 %v1591
        %v1729 = vpop.f32.mrb[0].mxu0
        %v1730 = vadd.f32 0.0, %v1729
        %v1731 = vpop.f32.mrb[0].mxu0
        %1732 = vmatprep.mubr.f32.mxu0 0.0
        %1733 = vmatmul.mubr.f32.gmra.mrb[0].mxu0 %v1594
        %v1734 = vpop.f32.mrb[0].mxu0
        %v1735 = vadd.f32 0.0, %v1734
        %v1736 = vpop.f32.mrb[0].mxu0
        %1737 = vmatprep.mubr.f32.mxu0 0.0
        %1738 = vmatmul.mubr.f32.gmra.mrb[0].mxu0 %v1597
        %v1739 = vpop.f32.mrb[0].mxu0
        %v1740 = vadd.f32 0.0, %v1739
        %v1741 = vpop.f32.mrb[0].mxu0
        %1742 = vmatprep.mubr.f32.mxu0 0.0
        %1743 = vmatmul.mubr.f32.gmra.mrb[0].mxu0 %v1600
        %v1744 = vpop.f32.mrb[0].mxu0
        %v1745 = vadd.f32 0.0, %v1744
        %v1746 = vpop.f32.mrb[0].mxu0
        %1747 = vmatprep.mubr.f32.mxu0 0.0
        %1748 = vmatmul.mubr.f32.gmra.mrb[0].mxu0 %v1603
        %v1749 = vpop.f32.mrb[0].mxu0
        %v1750 = vadd.f32 0.0, %v1749
        %v1751 = vpop.f32.mrb[0].mxu0
        %1752 = vdwg.mxu0
        %v1753 = vadd.f32 %v1523, %v1675
        %v1754 = vadd.f32 %v1524, %v1680
        %v1755 = vadd.f32 %v1525, %v1685
        %v1756 = vadd.f32 %v1526, %v1690
        %v1757 = vadd.f32 %v1527, %v1695
        %v1758 = vadd.f32 %v1528, %v1700
        %v1759 = vadd.f32 %v1529, %v1705
        %v1760 = vadd.f32 %v1530, %v1710
        %v1761 = vadd.f32 %v1531, %v1715
        %v1762 = vadd.f32 %v1532, %v1720
        %v1763 = vadd.f32 %v1533, %v1725
        %v1764 = vadd.f32 %v1534, %v1730
        %v1765 = vadd.f32 %v1535, %v1735
        %v1766 = vadd.f32 %v1536, %v1740
        %v1767 = vadd.f32 %v1537, %v1745
        %v1768 = vadd.f32 %v1538, %v1750
        %s1769 = scalar_lea.vmem [#allocation2], 48
        %v1770 = vld [vmem:[%s1769] sm:$0xff]
        %v1771 = vld [vmem:[%s1769 + $0x8] sm:$0xff]
        %v1772 = vld [vmem:[%s1769 + $0x18] sm:$0xff]
        %v1773 = vld [vmem:[%s1769 + $0x20] sm:$0xff]
        %v1774 = vld [vmem:[%s1769 + $0x30] sm:$0xff]
        %v1775 = vld [vmem:[%s1769 + $0x38] sm:$0xff]
        %v1776 = vld [vmem:[%s1769 + $0x48] sm:$0xff]
        %v1777 = vld [vmem:[%s1769 + $0x50] sm:$0xff]
        %v1778 = vld [vmem:[%s1769 + $0x60] sm:$0xff]
        %v1779 = vld [vmem:[%s1769 + $0x68] sm:$0xff]
        %v1780 = vld [vmem:[%s1769 + $0x78] sm:$0xff]
        %v1781 = vld [vmem:[%s1769 + $0x80] sm:$0xff]
        %v1782 = vld [vmem:[%s1769 + $0x90] sm:$0xff]
        %v1783 = vld [vmem:[%s1769 + $0x98] sm:$0xff]
        %v1784 = vld [vmem:[%s1769 + $0xa8] sm:$0xff]
        %v1785 = vld [vmem:[%s1769 + $0xb0] sm:$0xff]
        %s1786 = scalar_lea.vmem %s2, 24
        %v1787 = vld [vmem:[%s1786] sm:$0xf]
        %v1789 = vsel %vm346, %v1770, 0
        %v1792 = vsel %vm346, %v1771, 0
        %v1795 = vsel %vm346, %v1772, 0
        %v1798 = vsel %vm346, %v1773, 0
        %v1801 = vsel %vm346, %v1774, 0
        %v1804 = vsel %vm346, %v1775, 0
        %v1807 = vsel %vm346, %v1776, 0
        %v1810 = vsel %vm346, %v1777, 0
        %v1813 = vsel %vm346, %v1778, 0
        %v1816 = vsel %vm346, %v1779, 0
        %v1819 = vsel %vm346, %v1780, 0
        %v1822 = vsel %vm346, %v1781, 0
        %v1825 = vsel %vm346, %v1782, 0
        %v1828 = vsel %vm346, %v1783, 0
        %v1831 = vsel %vm346, %v1784, 0
        %v1834 = vsel %vm346, %v1785, 0
        %v1837 = vsel %vm503, %v1787, 0
        %1839 = vmatprep.subr.mxu0 0.0
        %1840 = vmatpush1.msra.mxu0 %v1837
        %1841 = vmatprep.subr.mxu0 0.0
        %1842 = vmatpush1.msra.mxu0 0.0
        %1843 = vmatprep.subr.mxu0 0.0
        %1844 = vmatpush1.msra.mxu0 0.0
        %1845 = vmatprep.subr.mxu0 0.0
        %1846 = vmatpush1.msra.mxu0 0.0
        %1847 = vmatprep.subr.mxu0 0.0
        %1848 = vmatpush1.msra.mxu0 0.0
        %1849 = vmatprep.subr.mxu0 0.0
        %1850 = vmatpush1.msra.mxu0 0.0
        %1851 = vmatprep.subr.mxu0 0.0
        %1852 = vmatpush1.msra.mxu0 0.0
        %1853 = vmatprep.subr.mxu0 0.0
        %1854 = vmatpush1.msra.mxu0 0.0
        %1855 = vmatprep.subr.mxu0 0.0
        %1856 = vmatpush1.msra.mxu0 0.0
        %1857 = vmatprep.subr.mxu0 0.0
        %1858 = vmatpush1.msra.mxu0 0.0
        %1859 = vmatprep.subr.mxu0 0.0
        %1860 = vmatpush1.msra.mxu0 0.0
        %1861 = vmatprep.subr.mxu0 0.0
        %1862 = vmatpush1.msra.mxu0 0.0
        %1863 = vmatprep.subr.mxu0 0.0
        %1864 = vmatpush1.msra.mxu0 0.0
        %1865 = vmatprep.subr.mxu0 0.0
        %1866 = vmatpush1.msra.mxu0 0.0
        %1867 = vmatprep.subr.mxu0 0.0
        %1868 = vmatpush1.msra.mxu0 0.0
        %1869 = vmatprep.subr.mxu0 0.0
        %1870 = vmatpush1.msra.mxu0 0.0
        %1871 = vmatprep.subr.mxu0 0.0
        %1872 = vmatpush1.msra.mxu0 0.0
        %1873 = vmatprep.subr.mxu0 0.0
        %1874 = vmatpush1.msra.mxu0 0.0
        %1875 = vmatprep.subr.mxu0 0.0
        %1876 = vmatpush1.msra.mxu0 0.0
        %1877 = vmatprep.subr.mxu0 0.0
        %1878 = vmatpush1.msra.mxu0 0.0
        %1879 = vmatprep.subr.mxu0 0.0
        %1880 = vmatpush1.msra.mxu0 0.0
        %1881 = vmatprep.subr.mxu0 0.0
        %1882 = vmatpush1.msra.mxu0 0.0
        %1883 = vmatprep.subr.mxu0 0.0
        %1884 = vmatpush1.msra.mxu0 0.0
        %1885 = vmatprep.subr.mxu0 0.0
        %1886 = vmatpush1.msra.mxu0 0.0
        %1887 = vmatprep.subr.mxu0 0.0
        %1888 = vmatpush1.msra.mxu0 0.0
        %1889 = vmatprep.subr.mxu0 0.0
        %1890 = vmatpush1.msra.mxu0 0.0
        %1891 = vmatprep.subr.mxu0 0.0
        %1892 = vmatpush1.msra.mxu0 0.0
        %1893 = vmatprep.subr.mxu0 0.0
        %1894 = vmatpush1.msra.mxu0 0.0
        %1895 = vmatprep.subr.mxu0 0.0
        %1896 = vmatpush1.msra.mxu0 0.0
        %1897 = vmatprep.subr.mxu0 0.0
        %1898 = vmatpush1.msra.mxu0 0.0
        %1899 = vmatprep.subr.mxu0 0.0
        %1900 = vmatpush1.msra.mxu0 0.0
        %1901 = vmatprep.subr.mxu0 0.0
        %1902 = vmatpush1.msra.mxu0 0.0
        %1903 = vmatprep.mubr.f32.mxu0 0.0
        %1904 = vmatmul.mubr.f32.gmra.mrb[0].mxu0 %v1789
        %v1905 = vpop.f32.mrb[0].mxu0
        %v1906 = vadd.f32 0.0, %v1905
        %v1907 = vpop.f32.mrb[0].mxu0
        %1908 = vmatprep.mubr.f32.mxu0 0.0
        %1909 = vmatmul.mubr.f32.gmra.mrb[0].mxu0 %v1792
        %v1910 = vpop.f32.mrb[0].mxu0
        %v1911 = vadd.f32 0.0, %v1910
        %v1912 = vpop.f32.mrb[0].mxu0
        %1913 = vmatprep.mubr.f32.mxu0 0.0
        %1914 = vmatmul.mubr.f32.gmra.mrb[0].mxu0 %v1795
        %v1915 = vpop.f32.mrb[0].mxu0
        %v1916 = vadd.f32 0.0, %v1915
        %v1917 = vpop.f32.mrb[0].mxu0
        %1918 = vmatprep.mubr.f32.mxu0 0.0
        %1919 = vmatmul.mubr.f32.gmra.mrb[0].mxu0 %v1798
        %v1920 = vpop.f32.mrb[0].mxu0
        %v1921 = vadd.f32 0.0, %v1920
        %v1922 = vpop.f32.mrb[0].mxu0
        %1923 = vmatprep.mubr.f32.mxu0 0.0
        %1924 = vmatmul.mubr.f32.gmra.mrb[0].mxu0 %v1801
        %v1925 = vpop.f32.mrb[0].mxu0
        %v1926 = vadd.f32 0.0, %v1925
        %v1927 = vpop.f32.mrb[0].mxu0
        %1928 = vmatprep.mubr.f32.mxu0 0.0
        %1929 = vmatmul.mubr.f32.gmra.mrb[0].mxu0 %v1804
        %v1930 = vpop.f32.mrb[0].mxu0
        %v1931 = vadd.f32 0.0, %v1930
        %v1932 = vpop.f32.mrb[0].mxu0
        %1933 = vmatprep.mubr.f32.mxu0 0.0
        %1934 = vmatmul.mubr.f32.gmra.mrb[0].mxu0 %v1807
        %v1935 = vpop.f32.mrb[0].mxu0
        %v1936 = vadd.f32 0.0, %v1935
        %v1937 = vpop.f32.mrb[0].mxu0
        %1938 = vmatprep.mubr.f32.mxu0 0.0
        %1939 = vmatmul.mubr.f32.gmra.mrb[0].mxu0 %v1810
        %v1940 = vpop.f32.mrb[0].mxu0
        %v1941 = vadd.f32 0.0, %v1940
        %v1942 = vpop.f32.mrb[0].mxu0
        %1943 = vmatprep.mubr.f32.mxu0 0.0
        %1944 = vmatmul.mubr.f32.gmra.mrb[0].mxu0 %v1813
        %v1945 = vpop.f32.mrb[0].mxu0
        %v1946 = vadd.f32 0.0, %v1945
        %v1947 = vpop.f32.mrb[0].mxu0
        %1948 = vmatprep.mubr.f32.mxu0 0.0
        %1949 = vmatmul.mubr.f32.gmra.mrb[0].mxu0 %v1816
        %v1950 = vpop.f32.mrb[0].mxu0
        %v1951 = vadd.f32 0.0, %v1950
        %v1952 = vpop.f32.mrb[0].mxu0
        %1953 = vmatprep.mubr.f32.mxu0 0.0
        %1954 = vmatmul.mubr.f32.gmra.mrb[0].mxu0 %v1819
        %v1955 = vpop.f32.mrb[0].mxu0
        %v1956 = vadd.f32 0.0, %v1955
        %v1957 = vpop.f32.mrb[0].mxu0
        %1958 = vmatprep.mubr.f32.mxu0 0.0
        %1959 = vmatmul.mubr.f32.gmra.mrb[0].mxu0 %v1822
        %v1960 = vpop.f32.mrb[0].mxu0
        %v1961 = vadd.f32 0.0, %v1960
        %v1962 = vpop.f32.mrb[0].mxu0
        %1963 = vmatprep.mubr.f32.mxu0 0.0
        %1964 = vmatmul.mubr.f32.gmra.mrb[0].mxu0 %v1825
        %v1965 = vpop.f32.mrb[0].mxu0
        %v1966 = vadd.f32 0.0, %v1965
        %v1967 = vpop.f32.mrb[0].mxu0
        %1968 = vmatprep.mubr.f32.mxu0 0.0
        %1969 = vmatmul.mubr.f32.gmra.mrb[0].mxu0 %v1828
        %v1970 = vpop.f32.mrb[0].mxu0
        %v1971 = vadd.f32 0.0, %v1970
        %v1972 = vpop.f32.mrb[0].mxu0
        %1973 = vmatprep.mubr.f32.mxu0 0.0
        %1974 = vmatmul.mubr.f32.gmra.mrb[0].mxu0 %v1831
        %v1975 = vpop.f32.mrb[0].mxu0
        %v1976 = vadd.f32 0.0, %v1975
        %v1977 = vpop.f32.mrb[0].mxu0
        %1978 = vmatprep.mubr.f32.mxu0 0.0
        %1979 = vmatmul.mubr.f32.gmra.mrb[0].mxu0 %v1834
        %v1980 = vpop.f32.mrb[0].mxu0
        %v1981 = vadd.f32 0.0, %v1980
        %v1982 = vpop.f32.mrb[0].mxu0
        %1983 = vdwg.mxu0
        %v1984 = vadd.f32 %v1753, %v1906
        %v1985 = vadd.f32 %v1754, %v1911
        %v1986 = vadd.f32 %v1755, %v1916
        %v1987 = vadd.f32 %v1756, %v1921
        %v1988 = vadd.f32 %v1757, %v1926
        %v1989 = vadd.f32 %v1758, %v1931
        %v1990 = vadd.f32 %v1759, %v1936
        %v1991 = vadd.f32 %v1760, %v1941
        %v1992 = vadd.f32 %v1761, %v1946
        %v1993 = vadd.f32 %v1762, %v1951
        %v1994 = vadd.f32 %v1763, %v1956
        %v1995 = vadd.f32 %v1764, %v1961
        %v1996 = vadd.f32 %v1765, %v1966
        %v1997 = vadd.f32 %v1766, %v1971
        %v1998 = vadd.f32 %v1767, %v1976
        %v1999 = vadd.f32 %v1768, %v1981
        %v2000 = vld [vmem:[%s1769 + $0x1] sm:$0xff]
        %v2001 = vld [vmem:[%s1769 + $0x9] sm:$0xff]
        %v2002 = vld [vmem:[%s1769 + $0x19] sm:$0xff]
        %v2003 = vld [vmem:[%s1769 + $0x21] sm:$0xff]
        %v2004 = vld [vmem:[%s1769 + $0x31] sm:$0xff]
        %v2005 = vld [vmem:[%s1769 + $0x39] sm:$0xff]
        %v2006 = vld [vmem:[%s1769 + $0x49] sm:$0xff]
        %v2007 = vld [vmem:[%s1769 + $0x51] sm:$0xff]
        %v2008 = vld [vmem:[%s1769 + $0x61] sm:$0xff]
        %v2009 = vld [vmem:[%s1769 + $0x69] sm:$0xff]
        %v2010 = vld [vmem:[%s1769 + $0x79] sm:$0xff]
        %v2011 = vld [vmem:[%s1769 + $0x81] sm:$0xff]
        %v2012 = vld [vmem:[%s1769 + $0x91] sm:$0xff]
        %v2013 = vld [vmem:[%s1769 + $0x99] sm:$0xff]
        %v2014 = vld [vmem:[%s1769 + $0xa9] sm:$0xff]
        %v2015 = vld [vmem:[%s1769 + $0xb1] sm:$0xff]
        %s2016 = scalar_lea.vmem %s2, 28
        %v2017 = vld [vmem:[%s2016] sm:$0xf]
        %v2019 = vsel %vm346, %v2000, 0
        %v2022 = vsel %vm346, %v2001, 0
        %v2025 = vsel %vm346, %v2002, 0
        %v2028 = vsel %vm346, %v2003, 0
        %v2031 = vsel %vm346, %v2004, 0
        %v2034 = vsel %vm346, %v2005, 0
        %v2037 = vsel %vm346, %v2006, 0
        %v2040 = vsel %vm346, %v2007, 0
        %v2043 = vsel %vm346, %v2008, 0
        %v2046 = vsel %vm346, %v2009, 0
        %v2049 = vsel %vm346, %v2010, 0
        %v2052 = vsel %vm346, %v2011, 0
        %v2055 = vsel %vm346, %v2012, 0
        %v2058 = vsel %vm346, %v2013, 0
        %v2061 = vsel %vm346, %v2014, 0
        %v2064 = vsel %vm346, %v2015, 0
        %v2067 = vsel %vm503, %v2017, 0
        %2069 = vmatprep.subr.mxu0 0.0
        %2070 = vmatpush1.msra.mxu0 %v2067
        %2071 = vmatprep.subr.mxu0 0.0
        %2072 = vmatpush1.msra.mxu0 0.0
        %2073 = vmatprep.subr.mxu0 0.0
        %2074 = vmatpush1.msra.mxu0 0.0
        %2075 = vmatprep.subr.mxu0 0.0
        %2076 = vmatpush1.msra.mxu0 0.0
        %2077 = vmatprep.subr.mxu0 0.0
        %2078 = vmatpush1.msra.mxu0 0.0
        %2079 = vmatprep.subr.mxu0 0.0
        %2080 = vmatpush1.msra.mxu0 0.0
        %2081 = vmatprep.subr.mxu0 0.0
        %2082 = vmatpush1.msra.mxu0 0.0
        %2083 = vmatprep.subr.mxu0 0.0
        %2084 = vmatpush1.msra.mxu0 0.0
        %2085 = vmatprep.subr.mxu0 0.0
        %2086 = vmatpush1.msra.mxu0 0.0
        %2087 = vmatprep.subr.mxu0 0.0
        %2088 = vmatpush1.msra.mxu0 0.0
        %2089 = vmatprep.subr.mxu0 0.0
        %2090 = vmatpush1.msra.mxu0 0.0
        %2091 = vmatprep.subr.mxu0 0.0
        %2092 = vmatpush1.msra.mxu0 0.0
        %2093 = vmatprep.subr.mxu0 0.0
        %2094 = vmatpush1.msra.mxu0 0.0
        %2095 = vmatprep.subr.mxu0 0.0
        %2096 = vmatpush1.msra.mxu0 0.0
        %2097 = vmatprep.subr.mxu0 0.0
        %2098 = vmatpush1.msra.mxu0 0.0
        %2099 = vmatprep.subr.mxu0 0.0
        %2100 = vmatpush1.msra.mxu0 0.0
        %2101 = vmatprep.subr.mxu0 0.0
        %2102 = vmatpush1.msra.mxu0 0.0
        %2103 = vmatprep.subr.mxu0 0.0
        %2104 = vmatpush1.msra.mxu0 0.0
        %2105 = vmatprep.subr.mxu0 0.0
        %2106 = vmatpush1.msra.mxu0 0.0
        %2107 = vmatprep.subr.mxu0 0.0
        %2108 = vmatpush1.msra.mxu0 0.0
        %2109 = vmatprep.subr.mxu0 0.0
        %2110 = vmatpush1.msra.mxu0 0.0
        %2111 = vmatprep.subr.mxu0 0.0
        %2112 = vmatpush1.msra.mxu0 0.0
        %2113 = vmatprep.subr.mxu0 0.0
        %2114 = vmatpush1.msra.mxu0 0.0
        %2115 = vmatprep.subr.mxu0 0.0
        %2116 = vmatpush1.msra.mxu0 0.0
        %2117 = vmatprep.subr.mxu0 0.0
        %2118 = vmatpush1.msra.mxu0 0.0
        %2119 = vmatprep.subr.mxu0 0.0
        %2120 = vmatpush1.msra.mxu0 0.0
        %2121 = vmatprep.subr.mxu0 0.0
        %2122 = vmatpush1.msra.mxu0 0.0
        %2123 = vmatprep.subr.mxu0 0.0
        %2124 = vmatpush1.msra.mxu0 0.0
        %2125 = vmatprep.subr.mxu0 0.0
        %2126 = vmatpush1.msra.mxu0 0.0
        %2127 = vmatprep.subr.mxu0 0.0
        %2128 = vmatpush1.msra.mxu0 0.0
        %2129 = vmatprep.subr.mxu0 0.0
        %2130 = vmatpush1.msra.mxu0 0.0
        %2131 = vmatprep.subr.mxu0 0.0
        %2132 = vmatpush1.msra.mxu0 0.0
        %2133 = vmatprep.mubr.f32.mxu0 0.0
        %2134 = vmatmul.mubr.f32.gmra.mrb[0].mxu0 %v2019
        %v2135 = vpop.f32.mrb[0].mxu0
        %v2136 = vadd.f32 0.0, %v2135
        %v2137 = vpop.f32.mrb[0].mxu0
        %2138 = vmatprep.mubr.f32.mxu0 0.0
        %2139 = vmatmul.mubr.f32.gmra.mrb[0].mxu0 %v2022
        %v2140 = vpop.f32.mrb[0].mxu0
        %v2141 = vadd.f32 0.0, %v2140
        %v2142 = vpop.f32.mrb[0].mxu0
        %2143 = vmatprep.mubr.f32.mxu0 0.0
        %2144 = vmatmul.mubr.f32.gmra.mrb[0].mxu0 %v2025
        %v2145 = vpop.f32.mrb[0].mxu0
        %v2146 = vadd.f32 0.0, %v2145
        %v2147 = vpop.f32.mrb[0].mxu0
        %2148 = vmatprep.mubr.f32.mxu0 0.0
        %2149 = vmatmul.mubr.f32.gmra.mrb[0].mxu0 %v2028
        %v2150 = vpop.f32.mrb[0].mxu0
        %v2151 = vadd.f32 0.0, %v2150
        %v2152 = vpop.f32.mrb[0].mxu0
        %2153 = vmatprep.mubr.f32.mxu0 0.0
        %2154 = vmatmul.mubr.f32.gmra.mrb[0].mxu0 %v2031
        %v2155 = vpop.f32.mrb[0].mxu0
        %v2156 = vadd.f32 0.0, %v2155
        %v2157 = vpop.f32.mrb[0].mxu0
        %2158 = vmatprep.mubr.f32.mxu0 0.0
        %2159 = vmatmul.mubr.f32.gmra.mrb[0].mxu0 %v2034
        %v2160 = vpop.f32.mrb[0].mxu0
        %v2161 = vadd.f32 0.0, %v2160
        %v2162 = vpop.f32.mrb[0].mxu0
        %2163 = vmatprep.mubr.f32.mxu0 0.0
        %2164 = vmatmul.mubr.f32.gmra.mrb[0].mxu0 %v2037
        %v2165 = vpop.f32.mrb[0].mxu0
        %v2166 = vadd.f32 0.0, %v2165
        %v2167 = vpop.f32.mrb[0].mxu0
        %2168 = vmatprep.mubr.f32.mxu0 0.0
        %2169 = vmatmul.mubr.f32.gmra.mrb[0].mxu0 %v2040
        %v2170 = vpop.f32.mrb[0].mxu0
        %v2171 = vadd.f32 0.0, %v2170
        %v2172 = vpop.f32.mrb[0].mxu0
        %2173 = vmatprep.mubr.f32.mxu0 0.0
        %2174 = vmatmul.mubr.f32.gmra.mrb[0].mxu0 %v2043
        %v2175 = vpop.f32.mrb[0].mxu0
        %v2176 = vadd.f32 0.0, %v2175
        %v2177 = vpop.f32.mrb[0].mxu0
        %2178 = vmatprep.mubr.f32.mxu0 0.0
        %2179 = vmatmul.mubr.f32.gmra.mrb[0].mxu0 %v2046
        %v2180 = vpop.f32.mrb[0].mxu0
        %v2181 = vadd.f32 0.0, %v2180
        %v2182 = vpop.f32.mrb[0].mxu0
        %2183 = vmatprep.mubr.f32.mxu0 0.0
        %2184 = vmatmul.mubr.f32.gmra.mrb[0].mxu0 %v2049
        %v2185 = vpop.f32.mrb[0].mxu0
        %v2186 = vadd.f32 0.0, %v2185
        %v2187 = vpop.f32.mrb[0].mxu0
        %2188 = vmatprep.mubr.f32.mxu0 0.0
        %2189 = vmatmul.mubr.f32.gmra.mrb[0].mxu0 %v2052
        %v2190 = vpop.f32.mrb[0].mxu0
        %v2191 = vadd.f32 0.0, %v2190
        %v2192 = vpop.f32.mrb[0].mxu0
        %2193 = vmatprep.mubr.f32.mxu0 0.0
        %2194 = vmatmul.mubr.f32.gmra.mrb[0].mxu0 %v2055
        %v2195 = vpop.f32.mrb[0].mxu0
        %v2196 = vadd.f32 0.0, %v2195
        %v2197 = vpop.f32.mrb[0].mxu0
        %2198 = vmatprep.mubr.f32.mxu0 0.0
        %2199 = vmatmul.mubr.f32.gmra.mrb[0].mxu0 %v2058
        %v2200 = vpop.f32.mrb[0].mxu0
        %v2201 = vadd.f32 0.0, %v2200
        %v2202 = vpop.f32.mrb[0].mxu0
        %2203 = vmatprep.mubr.f32.mxu0 0.0
        %2204 = vmatmul.mubr.f32.gmra.mrb[0].mxu0 %v2061
        %v2205 = vpop.f32.mrb[0].mxu0
        %v2206 = vadd.f32 0.0, %v2205
        %v2207 = vpop.f32.mrb[0].mxu0
        %2208 = vmatprep.mubr.f32.mxu0 0.0
        %2209 = vmatmul.mubr.f32.gmra.mrb[0].mxu0 %v2064
        %v2210 = vpop.f32.mrb[0].mxu0
        %v2211 = vadd.f32 0.0, %v2210
        %v2212 = vpop.f32.mrb[0].mxu0
        %2213 = vdwg.mxu0
        %v2214 = vadd.f32 %v1984, %v2136
        %v2215 = vadd.f32 %v1985, %v2141
        %v2216 = vadd.f32 %v1986, %v2146
        %v2217 = vadd.f32 %v1987, %v2151
        %v2218 = vadd.f32 %v1988, %v2156
        %v2219 = vadd.f32 %v1989, %v2161
        %v2220 = vadd.f32 %v1990, %v2166
        %v2221 = vadd.f32 %v1991, %v2171
        %v2222 = vadd.f32 %v1992, %v2176
        %v2223 = vadd.f32 %v1993, %v2181
        %v2224 = vadd.f32 %v1994, %v2186
        %v2225 = vadd.f32 %v1995, %v2191
        %v2226 = vadd.f32 %v1996, %v2196
        %v2227 = vadd.f32 %v1997, %v2201
        %v2228 = vadd.f32 %v1998, %v2206
        %v2229 = vadd.f32 %v1999, %v2211
        %v2230 = vld [vmem:[%s1769 + $0x2] sm:$0xff]
        %v2231 = vld [vmem:[%s1769 + $0xa] sm:$0xff]
        %v2232 = vld [vmem:[%s1769 + $0x1a] sm:$0xff]
        %v2233 = vld [vmem:[%s1769 + $0x22] sm:$0xff]
        %v2234 = vld [vmem:[%s1769 + $0x32] sm:$0xff]
        %v2235 = vld [vmem:[%s1769 + $0x3a] sm:$0xff]
        %v2236 = vld [vmem:[%s1769 + $0x4a] sm:$0xff]
        %v2237 = vld [vmem:[%s1769 + $0x52] sm:$0xff]
        %v2238 = vld [vmem:[%s1769 + $0x62] sm:$0xff]
        %v2239 = vld [vmem:[%s1769 + $0x6a] sm:$0xff]
        %v2240 = vld [vmem:[%s1769 + $0x7a] sm:$0xff]
        %v2241 = vld [vmem:[%s1769 + $0x82] sm:$0xff]
        %v2242 = vld [vmem:[%s1769 + $0x92] sm:$0xff]
        %v2243 = vld [vmem:[%s1769 + $0x9a] sm:$0xff]
        %v2244 = vld [vmem:[%s1769 + $0xaa] sm:$0xff]
        %v2245 = vld [vmem:[%s1769 + $0xb2] sm:$0xff]
        %s2246 = scalar_lea.vmem %s2, 32
        %v2247 = vld [vmem:[%s2246] sm:$0xf]
        %v2249 = vsel %vm346, %v2230, 0
        %v2252 = vsel %vm346, %v2231, 0
        %v2255 = vsel %vm346, %v2232, 0
        %v2258 = vsel %vm346, %v2233, 0
        %v2261 = vsel %vm346, %v2234, 0
        %v2264 = vsel %vm346, %v2235, 0
        %v2267 = vsel %vm346, %v2236, 0
        %v2270 = vsel %vm346, %v2237, 0
        %v2273 = vsel %vm346, %v2238, 0
        %v2276 = vsel %vm346, %v2239, 0
        %v2279 = vsel %vm346, %v2240, 0
        %v2282 = vsel %vm346, %v2241, 0
        %v2285 = vsel %vm346, %v2242, 0
        %v2288 = vsel %vm346, %v2243, 0
        %v2291 = vsel %vm346, %v2244, 0
        %v2294 = vsel %vm346, %v2245, 0
        %v2297 = vsel %vm503, %v2247, 0
        %2299 = vmatprep.subr.mxu0 0.0
        %2300 = vmatpush1.msra.mxu0 %v2297
        %2301 = vmatprep.subr.mxu0 0.0
        %2302 = vmatpush1.msra.mxu0 0.0
        %2303 = vmatprep.subr.mxu0 0.0
        %2304 = vmatpush1.msra.mxu0 0.0
        %2305 = vmatprep.subr.mxu0 0.0
        %2306 = vmatpush1.msra.mxu0 0.0
        %2307 = vmatprep.subr.mxu0 0.0
        %2308 = vmatpush1.msra.mxu0 0.0
        %2309 = vmatprep.subr.mxu0 0.0
        %2310 = vmatpush1.msra.mxu0 0.0
        %2311 = vmatprep.subr.mxu0 0.0
        %2312 = vmatpush1.msra.mxu0 0.0
        %2313 = vmatprep.subr.mxu0 0.0
        %2314 = vmatpush1.msra.mxu0 0.0
        %2315 = vmatprep.subr.mxu0 0.0
        %2316 = vmatpush1.msra.mxu0 0.0
        %2317 = vmatprep.subr.mxu0 0.0
        %2318 = vmatpush1.msra.mxu0 0.0
        %2319 = vmatprep.subr.mxu0 0.0
        %2320 = vmatpush1.msra.mxu0 0.0
        %2321 = vmatprep.subr.mxu0 0.0
        %2322 = vmatpush1.msra.mxu0 0.0
        %2323 = vmatprep.subr.mxu0 0.0
        %2324 = vmatpush1.msra.mxu0 0.0
        %2325 = vmatprep.subr.mxu0 0.0
        %2326 = vmatpush1.msra.mxu0 0.0
        %2327 = vmatprep.subr.mxu0 0.0
        %2328 = vmatpush1.msra.mxu0 0.0
        %2329 = vmatprep.subr.mxu0 0.0
        %2330 = vmatpush1.msra.mxu0 0.0
        %2331 = vmatprep.subr.mxu0 0.0
        %2332 = vmatpush1.msra.mxu0 0.0
        %2333 = vmatprep.subr.mxu0 0.0
        %2334 = vmatpush1.msra.mxu0 0.0
        %2335 = vmatprep.subr.mxu0 0.0
        %2336 = vmatpush1.msra.mxu0 0.0
        %2337 = vmatprep.subr.mxu0 0.0
        %2338 = vmatpush1.msra.mxu0 0.0
        %2339 = vmatprep.subr.mxu0 0.0
        %2340 = vmatpush1.msra.mxu0 0.0
        %2341 = vmatprep.subr.mxu0 0.0
        %2342 = vmatpush1.msra.mxu0 0.0
        %2343 = vmatprep.subr.mxu0 0.0
        %2344 = vmatpush1.msra.mxu0 0.0
        %2345 = vmatprep.subr.mxu0 0.0
        %2346 = vmatpush1.msra.mxu0 0.0
        %2347 = vmatprep.subr.mxu0 0.0
        %2348 = vmatpush1.msra.mxu0 0.0
        %2349 = vmatprep.subr.mxu0 0.0
        %2350 = vmatpush1.msra.mxu0 0.0
        %2351 = vmatprep.subr.mxu0 0.0
        %2352 = vmatpush1.msra.mxu0 0.0
        %2353 = vmatprep.subr.mxu0 0.0
        %2354 = vmatpush1.msra.mxu0 0.0
        %2355 = vmatprep.subr.mxu0 0.0
        %2356 = vmatpush1.msra.mxu0 0.0
        %2357 = vmatprep.subr.mxu0 0.0
        %2358 = vmatpush1.msra.mxu0 0.0
        %2359 = vmatprep.subr.mxu0 0.0
        %2360 = vmatpush1.msra.mxu0 0.0
        %2361 = vmatprep.subr.mxu0 0.0
        %2362 = vmatpush1.msra.mxu0 0.0
        %2363 = vmatprep.mubr.f32.mxu0 0.0
        %2364 = vmatmul.mubr.f32.gmra.mrb[0].mxu0 %v2249
        %v2365 = vpop.f32.mrb[0].mxu0
        %v2366 = vadd.f32 0.0, %v2365
        %v2367 = vpop.f32.mrb[0].mxu0
        %2368 = vmatprep.mubr.f32.mxu0 0.0
        %2369 = vmatmul.mubr.f32.gmra.mrb[0].mxu0 %v2252
        %v2370 = vpop.f32.mrb[0].mxu0
        %v2371 = vadd.f32 0.0, %v2370
        %v2372 = vpop.f32.mrb[0].mxu0
        %2373 = vmatprep.mubr.f32.mxu0 0.0
        %2374 = vmatmul.mubr.f32.gmra.mrb[0].mxu0 %v2255
        %v2375 = vpop.f32.mrb[0].mxu0
        %v2376 = vadd.f32 0.0, %v2375
        %v2377 = vpop.f32.mrb[0].mxu0
        %2378 = vmatprep.mubr.f32.mxu0 0.0
        %2379 = vmatmul.mubr.f32.gmra.mrb[0].mxu0 %v2258
        %v2380 = vpop.f32.mrb[0].mxu0
        %v2381 = vadd.f32 0.0, %v2380
        %v2382 = vpop.f32.mrb[0].mxu0
        %2383 = vmatprep.mubr.f32.mxu0 0.0
        %2384 = vmatmul.mubr.f32.gmra.mrb[0].mxu0 %v2261
        %v2385 = vpop.f32.mrb[0].mxu0
        %v2386 = vadd.f32 0.0, %v2385
        %v2387 = vpop.f32.mrb[0].mxu0
        %2388 = vmatprep.mubr.f32.mxu0 0.0
        %2389 = vmatmul.mubr.f32.gmra.mrb[0].mxu0 %v2264
        %v2390 = vpop.f32.mrb[0].mxu0
        %v2391 = vadd.f32 0.0, %v2390
        %v2392 = vpop.f32.mrb[0].mxu0
        %2393 = vmatprep.mubr.f32.mxu0 0.0
        %2394 = vmatmul.mubr.f32.gmra.mrb[0].mxu0 %v2267
        %v2395 = vpop.f32.mrb[0].mxu0
        %v2396 = vadd.f32 0.0, %v2395
        %v2397 = vpop.f32.mrb[0].mxu0
        %2398 = vmatprep.mubr.f32.mxu0 0.0
        %2399 = vmatmul.mubr.f32.gmra.mrb[0].mxu0 %v2270
        %v2400 = vpop.f32.mrb[0].mxu0
        %v2401 = vadd.f32 0.0, %v2400
        %v2402 = vpop.f32.mrb[0].mxu0
        %2403 = vmatprep.mubr.f32.mxu0 0.0
        %2404 = vmatmul.mubr.f32.gmra.mrb[0].mxu0 %v2273
        %v2405 = vpop.f32.mrb[0].mxu0
        %v2406 = vadd.f32 0.0, %v2405
        %v2407 = vpop.f32.mrb[0].mxu0
        %2408 = vmatprep.mubr.f32.mxu0 0.0
        %2409 = vmatmul.mubr.f32.gmra.mrb[0].mxu0 %v2276
        %v2410 = vpop.f32.mrb[0].mxu0
        %v2411 = vadd.f32 0.0, %v2410
        %v2412 = vpop.f32.mrb[0].mxu0
        %2413 = vmatprep.mubr.f32.mxu0 0.0
        %2414 = vmatmul.mubr.f32.gmra.mrb[0].mxu0 %v2279
        %v2415 = vpop.f32.mrb[0].mxu0
        %v2416 = vadd.f32 0.0, %v2415
        %v2417 = vpop.f32.mrb[0].mxu0
        %2418 = vmatprep.mubr.f32.mxu0 0.0
        %2419 = vmatmul.mubr.f32.gmra.mrb[0].mxu0 %v2282
        %v2420 = vpop.f32.mrb[0].mxu0
        %v2421 = vadd.f32 0.0, %v2420
        %v2422 = vpop.f32.mrb[0].mxu0
        %2423 = vmatprep.mubr.f32.mxu0 0.0
        %2424 = vmatmul.mubr.f32.gmra.mrb[0].mxu0 %v2285
        %v2425 = vpop.f32.mrb[0].mxu0
        %v2426 = vadd.f32 0.0, %v2425
        %v2427 = vpop.f32.mrb[0].mxu0
        %2428 = vmatprep.mubr.f32.mxu0 0.0
        %2429 = vmatmul.mubr.f32.gmra.mrb[0].mxu0 %v2288
        %v2430 = vpop.f32.mrb[0].mxu0
        %v2431 = vadd.f32 0.0, %v2430
        %v2432 = vpop.f32.mrb[0].mxu0
        %2433 = vmatprep.mubr.f32.mxu0 0.0
        %2434 = vmatmul.mubr.f32.gmra.mrb[0].mxu0 %v2291
        %v2435 = vpop.f32.mrb[0].mxu0
        %v2436 = vadd.f32 0.0, %v2435
        %v2437 = vpop.f32.mrb[0].mxu0
        %2438 = vmatprep.mubr.f32.mxu0 0.0
        %2439 = vmatmul.mubr.f32.gmra.mrb[0].mxu0 %v2294
        %v2440 = vpop.f32.mrb[0].mxu0
        %v2441 = vadd.f32 0.0, %v2440
        %v2442 = vpop.f32.mrb[0].mxu0
        %2443 = vdwg.mxu0
        %v2444 = vadd.f32 %v2214, %v2366
        %v2445 = vadd.f32 %v2215, %v2371
        %v2446 = vadd.f32 %v2216, %v2376
        %v2447 = vadd.f32 %v2217, %v2381
        %v2448 = vadd.f32 %v2218, %v2386
        %v2449 = vadd.f32 %v2219, %v2391
        %v2450 = vadd.f32 %v2220, %v2396
        %v2451 = vadd.f32 %v2221, %v2401
        %v2452 = vadd.f32 %v2222, %v2406
        %v2453 = vadd.f32 %v2223, %v2411
        %v2454 = vadd.f32 %v2224, %v2416
        %v2455 = vadd.f32 %v2225, %v2421
        %v2456 = vadd.f32 %v2226, %v2426
        %v2457 = vadd.f32 %v2227, %v2431
        %v2458 = vadd.f32 %v2228, %v2436
        %v2459 = vadd.f32 %v2229, %v2441
        %2460 = vst [vmem:[%s285] sm:$0xff] %v2444
        %2461 = vst [vmem:[%s285 + $0x8] sm:$0xff] %v2445
        %2462 = vst [vmem:[%s285 + $0x10] sm:$0xff] %v2446
        %2463 = vst [vmem:[%s285 + $0x18] sm:$0xff] %v2447
        %2464 = vst [vmem:[%s285 + $0x20] sm:$0xff] %v2448
        %2465 = vst [vmem:[%s285 + $0x28] sm:$0xff] %v2449
        %2466 = vst [vmem:[%s285 + $0x30] sm:$0xff] %v2450
        %2467 = vst [vmem:[%s285 + $0x38] sm:$0xff] %v2451
        %2468 = vst [vmem:[%s285 + $0x40] sm:$0xff] %v2452
        %2469 = vst [vmem:[%s285 + $0x48] sm:$0xff] %v2453
        %2470 = vst [vmem:[%s285 + $0x50] sm:$0xff] %v2454
        %2471 = vst [vmem:[%s285 + $0x58] sm:$0xff] %v2455
        %2472 = vst [vmem:[%s285 + $0x60] sm:$0xff] %v2456
        %2473 = vst [vmem:[%s285 + $0x68] sm:$0xff] %v2457
        %2474 = vst [vmem:[%s285 + $0x70] sm:$0xff] %v2458
        %2475 = vst [vmem:[%s285 + $0x78] sm:$0xff] %v2459
        %v2476 = vadd.f32 %v2444, %v2445
        %v2477 = vadd.f32 %v2476, %v2446
        %v2478 = vadd.f32 %v2477, %v2447
        %v2479 = vadd.f32 %v2478, %v2448
        %v2480 = vadd.f32 %v2479, %v2449
        %v2481 = vadd.f32 %v2480, %v2450
        %v2482 = vadd.f32 %v2481, %v2451
        %v2483 = vadd.f32 %v2482, %v2452
        %v2484 = vadd.f32 %v2483, %v2453
        %v2485 = vadd.f32 %v2484, %v2454
        %v2486 = vadd.f32 %v2485, %v2455
        %v2487 = vadd.f32 %v2486, %v2456
        %v2488 = vadd.f32 %v2487, %v2457
        %v2489 = vadd.f32 %v2488, %v2458
        %v2490 = vadd.f32 %v2489, %v2459
        %v2491 = vrot.slane %v2490, 4
        %v2492 = vadd.f32 %v2490, %v2491
        %v2493 = vrot.slane %v2492, 2
        %v2494 = vadd.f32 %v2492, %v2493
        %v2495 = vrot.slane %v2494, 1
        %v2496 = vadd.f32 %v2494, %v2495
        %2497 = vst [vmem:[%s291] sm:$0x1] %v2496
        %v2498 = vmul.f32 %v2444, %v2444
        %v2499 = vmul.f32 %v2445, %v2445
        %v2500 = vmul.f32 %v2446, %v2446
        %v2501 = vmul.f32 %v2447, %v2447
        %v2502 = vmul.f32 %v2448, %v2448
        %v2503 = vmul.f32 %v2449, %v2449
        %v2504 = vmul.f32 %v2450, %v2450
        %v2505 = vmul.f32 %v2451, %v2451
        %v2506 = vmul.f32 %v2452, %v2452
        %v2507 = vmul.f32 %v2453, %v2453
        %v2508 = vmul.f32 %v2454, %v2454
        %v2509 = vmul.f32 %v2455, %v2455
        %v2510 = vmul.f32 %v2456, %v2456
        %v2511 = vmul.f32 %v2457, %v2457
        %v2512 = vmul.f32 %v2458, %v2458
        %v2513 = vmul.f32 %v2459, %v2459
        %v2514 = vadd.f32 %v2498, %v2499
        %v2515 = vadd.f32 %v2514, %v2500
        %v2516 = vadd.f32 %v2515, %v2501
        %v2517 = vadd.f32 %v2516, %v2502
        %v2518 = vadd.f32 %v2517, %v2503
        %v2519 = vadd.f32 %v2518, %v2504
        %v2520 = vadd.f32 %v2519, %v2505
        %v2521 = vadd.f32 %v2520, %v2506
        %v2522 = vadd.f32 %v2521, %v2507
        %v2523 = vadd.f32 %v2522, %v2508
        %v2524 = vadd.f32 %v2523, %v2509
        %v2525 = vadd.f32 %v2524, %v2510
        %v2526 = vadd.f32 %v2525, %v2511
        %v2527 = vadd.f32 %v2526, %v2512
        %v2528 = vadd.f32 %v2527, %v2513
        %v2529 = vrot.slane %v2528, 4
        %v2530 = vadd.f32 %v2528, %v2529
        %v2531 = vrot.slane %v2530, 2
        %v2532 = vadd.f32 %v2530, %v2531
        %v2533 = vrot.slane %v2532, 1
        %v2534 = vadd.f32 %v2532, %v2533
        %2535 = vst [vmem:[%s297] sm:$0x1] %v2534
        %s2536 = sand.u32 %s124, 1
        %s2537 = scalar_lea.sflag [#allocation4], %s2536
        %s2538 = sand.u32 %s124, 1
        %s2539 = smul.addr %s2538, 128
        %s2540 = scalar_lea.vmem [#allocation3], %s2539
        %s2541 = sand.u32 %s23, 1
        %s2542 = scalar_lea.sflag [#allocation6], %s2541
        %s2543 = sand.u32 %s152, 1
        %s2544 = scalar_lea.vmem [#allocation5], %s2543
        %s2545 = sand.u32 %s23, 1
        %s2546 = scalar_lea.sflag [#allocation6], %s2545
        %s2547 = sand.u32 %s180, 1
        %s2548 = scalar_lea.vmem [#allocation7], %s2547
        // Predicated region
        $region33: #{tpu_custom_call.1} parent=31 // pred_check
          %p2549 = pneg %p134
        $region34: #{tpu_custom_call.1} parent=31 // pred_check_branch
          %2551 = sbr.rel (%p2549) target = $region36
        $region35: #{tpu_custom_call.1} parent=31 // pred_region
          %s2553 = ssub.s32 2048, 2048
          %2554 = vsyncadd %s2537, %s2553
          %s2555 = smul.addr %s28, 16
          %s2556 = smul.addr %s27, 32
          %s2557 = sadd.s32 %s2555, %s2556
          %s2558 = smul.addr %s2557, 128
          %s2559 = scalar_lea.hbm %s3, %s2558
          %s2560 = sshll.u32 %s2540, 4
          %s2561 = int_to_ptr.vmem [resolvable:$true] %s2560
          %2566 = dma.vmem_to_hbm [thread:$0]  %s2561, 2048, %s2559, %s2537, 128, 128, 8
        $region36: #{tpu_custom_call.1} parent=31 // pred_fallthru
          _
        // Predicated region
        $region37: #{tpu_custom_call.1} parent=31 // pred_check
          %p2567 = pneg %p162
        $region38: #{tpu_custom_call.1} parent=31 // pred_check_branch
          %2569 = sbr.rel (%p2567) target = $region40
        $region39: #{tpu_custom_call.1} parent=31 // pred_region
          %s2571 = ssub.s32 16, 16
          %2572 = vsyncadd %s2542, %s2571
          %s2573 = smul.addr %s27, 2
          %s2574 = sadd.s32 %s28, %s2573
          %s2575 = smul.addr %s2574, 16
          %s2576 = scalar_lea.hbm %s4, %s2575
          %s2578 = sshll.u32 %s2544, 4
          %s2579 = int_to_ptr.vmem [resolvable:$true] %s2578
          %2581 = dma.vmem_to_hbm [thread:$0]  %s2579, 16, %s2576, %s2542
        $region40: #{tpu_custom_call.1} parent=31 // pred_fallthru
          _
        // Predicated region
        $region41: #{tpu_custom_call.1} parent=31 // pred_check
          %p2582 = pneg %p190
        $region42: #{tpu_custom_call.1} parent=31 // pred_check_branch
          %2584 = sbr.rel (%p2582) target = $region44
        $region43: #{tpu_custom_call.1} parent=31 // pred_region
          %s2586 = ssub.s32 16, 16
          %2587 = vsyncadd %s2546, %s2586
          %s2588 = smul.addr %s27, 2
          %s2589 = sadd.s32 %s28, %s2588
          %s2590 = smul.addr %s2589, 16
          %s2591 = scalar_lea.hbm %s5, %s2590
          %s2593 = sshll.u32 %s2548, 4
          %s2594 = int_to_ptr.vmem [resolvable:$true] %s2593
          %2596 = dma.vmem_to_hbm [thread:$0]  %s2594, 16, %s2591, %s2546
        $region44: #{tpu_custom_call.1} parent=31 // pred_fallthru
          _
      $region32: #{tpu_custom_call.1} parent=5 // pred_fallthru
        _
      %p2597 = scmp.le.s32.totalorder 2, %s18
      // Predicated region
      $region45: #{tpu_custom_call.1} parent=5 // pred_check
        %p2598 = pneg %p2597
      $region46: #{tpu_custom_call.1} parent=5 // pred_check_branch
        %2600 = sbr.rel (%p2598) target = $region48
      $region47: #{tpu_custom_call.1} parent=5 // pred_region
        %s2601 = ssub.s32 %s18, 2
        // Predicated region
        $region49: #{tpu_custom_call.1} parent=47 // pred_check
          %p2602 = pneg %p140
        $region50: #{tpu_custom_call.1} parent=47 // pred_check_branch
          %2604 = sbr.rel (%p2602) target = $region52
        $region51: #{tpu_custom_call.1} parent=47 // pred_region
          %s2605 = sand.u32 %s125, 1
          %s2606 = scalar_lea.sflag [#allocation4], %s2605
          %s2607 = sand.u32 %s125, 1
          %s2608 = smul.addr %s2607, 128
          %s2609 = scalar_lea.vmem [#allocation3], %s2608
          %2610 = dma.done %s2606, 2048
        $region52: #{tpu_custom_call.1} parent=47 // pred_fallthru
          _
        // Predicated region
        $region53: #{tpu_custom_call.1} parent=47 // pred_check
          %p2611 = pneg %p168
        $region54: #{tpu_custom_call.1} parent=47 // pred_check_branch
          %2613 = sbr.rel (%p2611) target = $region56
        $region55: #{tpu_custom_call.1} parent=47 // pred_region
          %s2614 = sand.u32 %s24, 1
          %s2615 = scalar_lea.sflag [#allocation6], %s2614
          %s2616 = sand.u32 %s153, 1
          %s2617 = scalar_lea.vmem [#allocation5], %s2616
          %2618 = dma.done %s2615, 16
        $region56: #{tpu_custom_call.1} parent=47 // pred_fallthru
          _
        // Predicated region
        $region57: #{tpu_custom_call.1} parent=47 // pred_check
          %p2619 = pneg %p196
        $region58: #{tpu_custom_call.1} parent=47 // pred_check_branch
          %2621 = sbr.rel (%p2619) target = $region60
        $region59: #{tpu_custom_call.1} parent=47 // pred_region
          %s2622 = sand.u32 %s24, 1
          %s2623 = scalar_lea.sflag [#allocation6], %s2622
          %s2624 = sand.u32 %s181, 1
          %s2625 = scalar_lea.vmem [#allocation7], %s2624
          %2626 = dma.done %s2623, 16
        $region60: #{tpu_custom_call.1} parent=47 // pred_fallthru
          _
      $region48: #{tpu_custom_call.1} parent=5 // pred_fallthru
        _
    $region6: #{tpu_custom_call.1} parent=1 // loop_footer
      %s22 = sadd.s32 1, %s18
    $region7: #{tpu_custom_call.1} parent=1 // loop_footer_branch
      %17 = sbr.rel target = $region3
    $region8: #{tpu_custom_call.1} parent=1 // loop_exit
      _
    %2627 = vsyncpa [#allocation4], 1
    %s2628 = scalar_lea.sflag [#allocation4], 1
    %2629 = vsyncpa %s2628, 1
    %2630 = vsyncpa [#allocation6], 1
    %s2631 = scalar_lea.sflag [#allocation6], 1
    %2632 = vsyncpa %s2631, 1

</llo_original>
